<compile_context>
chip_gen: v6e
topology: v6e:2x2x1
jax: 0.10.0
libtpu: 0.0.40
codegen_flags: <defaults>
</compile_context>

<pallas_src>
import functools

import jax
import jax.numpy as jnp
import numpy as np
from jax import lax
from jax.experimental import pallas as pl
from jax.experimental.pallas import tpu as pltpu


def _round_up(x, m):
    return (x + m - 1) // m * m


def _cdiv(a, b):
    return (a + b - 1) // b


# --------------------------------------------------------------------------
# Kernel
# --------------------------------------------------------------------------
def _categorical_q_kernel(num_actions, atoms,
                          x_ref, w1_ref, b1_ref, w2_ref, b2_ref, w3_ref, b3_ref,
                          o_ref):
    # GEMM 1: convolution expressed as a dense matmul directly from the raw
    # [TILE_B, C*H*W] input; columns are already in torch NCHW flatten order,
    # so no in-kernel regrouping is needed.
    h1 = jnp.dot(x_ref[...], w1_ref[...], preferred_element_type=jnp.float32)
    h1 = jnp.maximum(h1 + b1_ref[...], 0.0).astype(jnp.bfloat16)

    # GEMM 2: fc_hidden (N padded to a multiple of 128 lanes).
    h2 = jnp.dot(h1, w2_ref[...], preferred_element_type=jnp.float32)
    h2 = jnp.maximum(h2 + b2_ref[...], 0.0).astype(jnp.bfloat16)

    # GEMM 3: lin (output columns padded to a multiple of 128 lanes).
    logits = jnp.dot(h2, w3_ref[...], preferred_element_type=jnp.float32) + b3_ref[...]

    # Per-action softmax with a true per-group max (numerically matches
    # jax.nn.softmax even when action groups are far apart).  num_actions is a
    # small static int, so this unrolls into a handful of lane-slice ops.
    tile_b, naa_pad = logits.shape
    col = lax.broadcasted_iota(jnp.int32, (1, naa_pad), 1)
    m = jnp.zeros_like(logits)     # pad columns: logits==0 -> exp(0)=1
    s = jnp.ones_like(logits)      # pad columns: denom 1 (sliced off outside)
    for a in range(num_actions):
        lo, hi = a * atoms, (a + 1) * atoms
        g = logits[:, lo:hi]                                   # [tile_b, atoms]
        gmax = jnp.max(g, axis=-1, keepdims=True)              # [tile_b, 1]
        gsum = jnp.sum(jnp.exp(g - gmax), axis=-1, keepdims=True)
        in_g = jnp.logical_and(col >= lo, col < hi)            # [1, naa_pad]
        m = jnp.where(in_g, gmax, m)
        s = jnp.where(in_g, gsum, s)

    probs = jnp.exp(logits - m) * pl.reciprocal(s, approx=True)
    o_ref[...] = probs.astype(o_ref.dtype)                     # full-width store


# --------------------------------------------------------------------------
# One-time host-side weight packing (hoist out of the per-call forward).
# --------------------------------------------------------------------------
def pack_params(params, H, W, num_actions, atoms):
    conv_w = np.asarray(params["conv_w"], np.float32)   # [16, C, 3, 3] (OIHW)
    conv_b = np.asarray(params["conv_b"], np.float32)   # [16]
    fc_w = np.asarray(params["fc_w"], np.float32)       # [hidden, 16*OHW]
    fc_b = np.asarray(params["fc_b"], np.float32)       # [hidden]
    lin_w = np.asarray(params["lin_w"], np.float32)     # [naa, hidden]
    lin_b = np.asarray(params["lin_b"], np.float32)     # [naa]

    OC, C, KH, KW = conv_w.shape
    OH, OW = H - KH + 1, W - KW + 1
    OHW = OH * OW
    CHW = C * H * W
    NLU = OC * OHW
    hidden = fc_w.shape[0]
    naa = num_actions * atoms
    assert fc_w.shape[1] == NLU and lin_w.shape == (naa, hidden)

    # Dense conv-as-GEMM weight: w1[k, j] = conv_w[oc, c, dh, dw] for
    # k = c*H*W + (oh+dh)*W + (ow+dw) and j = oc*OHW + oh*OW + ow (torch order).
    w1 = np.zeros((CHW, NLU), np.float32)
    oc = np.arange(OC)[:, None, None, None, None, None]
    c = np.arange(C)[None, :, None, None, None, None]
    dh = np.arange(KH)[None, None, :, None, None, None]
    dw = np.arange(KW)[None, None, None, :, None, None]
    oh = np.arange(OH)[None, None, None, None, :, None]
    ow = np.arange(OW)[None, None, None, None, None, :]
    k_idx = c * (H * W) + (oh + dh) * W + (ow + dw)
    j_idx = oc * OHW + oh * OW + ow
    k_b, j_b = np.broadcast_arrays(k_idx, j_idx)
    v_b = np.broadcast_to(conv_w[:, :, :, :, None, None], k_b.shape)
    w1[k_b.reshape(-1), j_b.reshape(-1)] = v_b.reshape(-1)
    b1 = np.repeat(conv_b, OHW)[None, :]                       # [1, NLU]

    # Pad hidden / num_actions*atoms to lane-dense widths (zero columns).
    hidden_pad = _round_up(hidden, 128)
    naa_pad = _round_up(naa, 128)

    w2 = np.zeros((NLU, hidden_pad), np.float32)
    w2[:, :hidden] = fc_w.T
    b2 = np.zeros((1, hidden_pad), np.float32)
    b2[0, :hidden] = fc_b
    w3 = np.zeros((hidden_pad, naa_pad), np.float32)
    w3[:hidden, :naa] = lin_w.T
    b3 = np.zeros((1, naa_pad), np.float32)
    b3[0, :naa] = lin_b

    return dict(
        w1=jnp.asarray(w1, jnp.bfloat16), b1=jnp.asarray(b1, jnp.float32),
        w2=jnp.asarray(w2, jnp.bfloat16), b2=jnp.asarray(b2, jnp.float32),
        w3=jnp.asarray(w3, jnp.bfloat16), b3=jnp.asarray(b3, jnp.float32),
        num_actions=int(num_actions), atoms=int(atoms),
    )


# --------------------------------------------------------------------------
# Forward
# --------------------------------------------------------------------------
def categorical_q_forward(x, packed, *, tile_b_max=256):
    w1, b1 = packed["w1"], packed["b1"]
    w2, b2 = packed["w2"], packed["b2"]
    w3, b3 = packed["w3"], packed["b3"]
    num_actions, atoms = packed["num_actions"], packed["atoms"]
    naa = num_actions * atoms
    naa_pad = w3.shape[1]

    B = x.shape[0]
    CHW = int(np.prod(x.shape[1:]))
    assert CHW == w1.shape[0], "input spatial/channel shape mismatch with packed params"

    # Raw x, lane-dense, bf16 at the kernel boundary (no im2col in HBM).
    x_flat = x.reshape(B, CHW).astype(jnp.bfloat16)

    # Batch tiling: ~ceil(B/2) rounded to 8 (capped at 256) -> grid >= 2 for
    # v7x's two TensorCores once B > 8, while tiles stay large enough to
    # amortize per-step overhead on v5e/v6e and comfortably fit 64 MiB VMEM.
    tile_b = max(8, min(tile_b_max, _round_up(_cdiv(B, 2), 8)))
    b_pad = _round_up(B, tile_b)
    if b_pad != B:
        x_flat = jnp.pad(x_flat, ((0, b_pad - B), (0, 0)))

    kernel = functools.partial(_categorical_q_kernel, num_actions, atoms)

    def full_spec(shape):
        nd = len(shape)
        return pl.BlockSpec(shape, lambda i, _nd=nd: (0,) * _nd)

    out = pl.pallas_call(
        kernel,
        out_shape=jax.ShapeDtypeStruct((b_pad, naa_pad), jnp.float32),
        grid=(b_pad // tile_b,),
        in_specs=[
            pl.BlockSpec((tile_b, CHW), lambda i: (i, 0)),
            full_spec(w1.shape), full_spec(b1.shape),
            full_spec(w2.shape), full_spec(b2.shape),
            full_spec(w3.shape), full_spec(b3.shape),
        ],
        out_specs=pl.BlockSpec((tile_b, naa_pad), lambda i: (i, 0)),
        compiler_params=pltpu.CompilerParams(
            dimension_semantics=("parallel",)),
    )(x_flat, w1, b1, w2, b2, w3, b3)

    return out[:B, :naa].reshape(B, num_actions, atoms)


# --------------------------------------------------------------------------
# Synthetic init + pure-JAX reference
# --------------------------------------------------------------------------
def init_params(key, in_channels, num_actions, atoms, hidden):
    # Deterministic synthetic init mimicking torch default U(-1/sqrt(fan_in), +).
    num_linear_units = 8 * 8 * 16
    ks = jax.random.split(key, 6)

    def u(k, shape, fan_in):
        bound = 1.0 / float(np.sqrt(fan_in))
        return jax.random.uniform(k, shape, jnp.float32, -bound, bound)

    conv_fan = in_channels * 9
    return dict(
        conv_w=u(ks[0], (16, in_channels, 3, 3), conv_fan),
        conv_b=u(ks[1], (16,), conv_fan),
        fc_w=u(ks[2], (hidden, num_linear_units), num_linear_units),
        fc_b=u(ks[3], (hidden,), num_linear_units),
        lin_w=u(ks[4], (num_actions * atoms, hidden), hidden),
        lin_b=u(ks[5], (num_actions * atoms,), hidden),
    )


def reference_forward(x, params, num_actions, atoms):
    # Pure-JAX f32 reference mirroring the PyTorch forward.
    y = lax.conv_general_dilated(
        x, params["conv_w"], window_strides=(1, 1), padding="VALID",
        dimension_numbers=("NCHW", "OIHW", "NCHW"))
    y = y + params["conv_b"][None, :, None, None]
    y = jnp.maximum(y, 0.0)
    y = y.reshape(y.shape[0], -1)
    y = jnp.maximum(y @ params["fc_w"].T + params["fc_b"], 0.0)
    y = y @ params["lin_w"].T + params["lin_b"]
    y = y.reshape(y.shape[0], num_actions, atoms)
    return jax.nn.softmax(y, axis=-1)


if __name__ == "__main__":
    B, C, H, W = 2, 4, 10, 10        # 10x10 spatial is implied by size_linear_unit(10)
    hidden, num_actions, atoms = 32, 4, 8

    key = jax.random.PRNGKey(0)
    kx, kp = jax.random.split(key)
    x = jax.random.normal(kx, (B, C, H, W), jnp.float32)
    params = init_params(kp, C, num_actions, atoms, hidden)

    packed = pack_params(params, H, W, num_actions, atoms)   # one-time repack
    out = categorical_q_forward(x, packed)
    out = jax.block_until_ready(out)

    ref = reference_forward(x, params, num_actions, atoms)
    assert out.shape == (B, num_actions, atoms)
    # bf16 matmul inputs + approx reciprocal -> loosened tolerance vs f32 ref.
    np.testing.assert_allclose(np.asarray(out), np.asarray(ref), rtol=2e-2, atol=1e-2)
    print("KERNEL_OK")
</pallas_src>

<mosaic_0001>
module attributes {stable_mosaic.version = 11 : i64} {
  func.func @_categorical_q_kernel(%arg0: i32, %arg1: memref<8x400xbf16, #tpu.memory_space<vmem>>, %arg2: memref<400x1024xbf16, #tpu.memory_space<vmem>>, %arg3: memref<1x1024xf32, #tpu.memory_space<vmem>>, %arg4: memref<1024x128xbf16, #tpu.memory_space<vmem>>, %arg5: memref<1x128xf32, #tpu.memory_space<vmem>>, %arg6: memref<128x128xbf16, #tpu.memory_space<vmem>>, %arg7: memref<1x128xf32, #tpu.memory_space<vmem>>, %arg8: memref<8x128xf32, #tpu.memory_space<vmem>>) attributes {dimension_semantics = [#tpu.dimension_semantics<parallel>], iteration_bounds = array<i64: 1>, scalar_prefetch = 0 : i64, scratch_operands = 0 : i64, tpu.core_type = #tpu.core_type<tc>, window_params = [{transform_indices = @transform_0, window_bounds = array<i64: 8, 400>}, {pipeline_mode = #tpu.pipeline_mode<synchronous>, transform_indices = @transform_1, window_bounds = array<i64: 400, 1024>}, {pipeline_mode = #tpu.pipeline_mode<synchronous>, transform_indices = @transform_2, window_bounds = array<i64: 1, 1024>}, {pipeline_mode = #tpu.pipeline_mode<synchronous>, transform_indices = @transform_3, window_bounds = array<i64: 1024, 128>}, {pipeline_mode = #tpu.pipeline_mode<synchronous>, transform_indices = @transform_4, window_bounds = array<i64: 1, 128>}, {pipeline_mode = #tpu.pipeline_mode<synchronous>, transform_indices = @transform_5, window_bounds = array<i64: 128, 128>}, {pipeline_mode = #tpu.pipeline_mode<synchronous>, transform_indices = @transform_6, window_bounds = array<i64: 1, 128>}, {transform_indices = @transform_7, window_bounds = array<i64: 8, 128>}]} {
    %c0 = arith.constant 0 : index
    %c0_0 = arith.constant 0 : index
    %0 = vector.load %arg1[%c0, %c0_0] : memref<8x400xbf16, #tpu.memory_space<vmem>>, vector<8x400xbf16>
    %c0_1 = arith.constant 0 : index
    %c0_2 = arith.constant 0 : index
    %1 = vector.load %arg2[%c0_1, %c0_2] : memref<400x1024xbf16, #tpu.memory_space<vmem>>, vector<400x1024xbf16>
    %cst = arith.constant dense<0.000000e+00> : vector<8x1024xf32>
    %2 = tpu.matmul %0, %1, %cst {dimension_numbers = #tpu.dot_dimension_numbers<[1], [0], [0], [1], [0, 0, 1, 1], [], []>} : vector<8x400xbf16>, vector<400x1024xbf16>, vector<8x1024xf32> -> vector<8x1024xf32>
    %c0_3 = arith.constant 0 : index
    %c0_4 = arith.constant 0 : index
    %3 = vector.load %arg3[%c0_3, %c0_4] : memref<1x1024xf32, #tpu.memory_space<vmem>>, vector<1x1024xf32>
    %4 = vector.broadcast %3 : vector<1x1024xf32> to vector<8x1024xf32>
    %5 = arith.addf %2, %4 : vector<8x1024xf32>
    %cst_5 = arith.constant 0.000000e+00 : f32
    %6 = vector.broadcast %cst_5 : f32 to vector<8x1024xf32>
    %7 = arith.maximumf %5, %6 : vector<8x1024xf32>
    %8 = arith.truncf %7 : vector<8x1024xf32> to vector<8x1024xbf16>
    %c0_6 = arith.constant 0 : index
    %c0_7 = arith.constant 0 : index
    %9 = vector.load %arg4[%c0_6, %c0_7] : memref<1024x128xbf16, #tpu.memory_space<vmem>>, vector<1024x128xbf16>
    %cst_8 = arith.constant dense<0.000000e+00> : vector<8x128xf32>
    %10 = tpu.matmul %8, %9, %cst_8 {dimension_numbers = #tpu.dot_dimension_numbers<[1], [0], [0], [1], [0, 0, 1, 1], [], []>} : vector<8x1024xbf16>, vector<1024x128xbf16>, vector<8x128xf32> -> vector<8x128xf32>
    %c0_9 = arith.constant 0 : index
    %c0_10 = arith.constant 0 : index
    %11 = vector.load %arg5[%c0_9, %c0_10] : memref<1x128xf32, #tpu.memory_space<vmem>>, vector<1x128xf32>
    %12 = vector.broadcast %11 : vector<1x128xf32> to vector<8x128xf32>
    %13 = arith.addf %10, %12 : vector<8x128xf32>
    %cst_11 = arith.constant 0.000000e+00 : f32
    %14 = vector.broadcast %cst_11 : f32 to vector<8x128xf32>
    %15 = arith.maximumf %13, %14 : vector<8x128xf32>
    %16 = arith.truncf %15 : vector<8x128xf32> to vector<8x128xbf16>
    %c0_12 = arith.constant 0 : index
    %c0_13 = arith.constant 0 : index
    %17 = vector.load %arg6[%c0_12, %c0_13] : memref<128x128xbf16, #tpu.memory_space<vmem>>, vector<128x128xbf16>
    %cst_14 = arith.constant dense<0.000000e+00> : vector<8x128xf32>
    %18 = tpu.matmul %16, %17, %cst_14 {dimension_numbers = #tpu.dot_dimension_numbers<[1], [0], [0], [1], [0, 0, 1, 1], [], []>} : vector<8x128xbf16>, vector<128x128xbf16>, vector<8x128xf32> -> vector<8x128xf32>
    %c0_15 = arith.constant 0 : index
    %c0_16 = arith.constant 0 : index
    %19 = vector.load %arg7[%c0_15, %c0_16] : memref<1x128xf32, #tpu.memory_space<vmem>>, vector<1x128xf32>
    %20 = vector.broadcast %19 : vector<1x128xf32> to vector<8x128xf32>
    %21 = arith.addf %18, %20 : vector<8x128xf32>
    %22 = tpu.iota {dimensions = array<i32: 1>} : vector<1x128xi32>
    %cst_17 = arith.constant 0.000000e+00 : f32
    %23 = vector.broadcast %cst_17 : f32 to vector<8x128xf32>
    %cst_18 = arith.constant 1.000000e+00 : f32
    %24 = vector.broadcast %cst_18 : f32 to vector<8x128xf32>
    %25 = vector.extract_strided_slice %21 {offsets = [0, 0], sizes = [8, 8], strides = [1, 1]} : vector<8x128xf32> to vector<8x8xf32>
    %cst_19 = arith.constant dense<0xFF800000> : vector<8xf32>
    %26 = vector.multi_reduction <maximumf>, %25, %cst_19 [1] : vector<8x8xf32> to vector<8xf32>
    %27 = vector.shape_cast %26 : vector<8xf32> to vector<8x1xf32>
    %28 = vector.broadcast %27 : vector<8x1xf32> to vector<8x8xf32>
    %29 = arith.subf %25, %28 : vector<8x8xf32>
    %30 = math.exp %29 : vector<8x8xf32>
    %cst_20 = arith.constant dense<0.000000e+00> : vector<8xf32>
    %31 = vector.multi_reduction <add>, %30, %cst_20 [1] : vector<8x8xf32> to vector<8xf32>
    %32 = vector.shape_cast %31 : vector<8xf32> to vector<8x1xf32>
    %c0_i32 = arith.constant 0 : i32
    %33 = vector.broadcast %c0_i32 : i32 to vector<1x128xi32>
    %34 = arith.cmpi sge, %22, %33 : vector<1x128xi32>
    %c8_i32 = arith.constant 8 : i32
    %35 = vector.broadcast %c8_i32 : i32 to vector<1x128xi32>
    %36 = arith.cmpi slt, %22, %35 : vector<1x128xi32>
    %37 = arith.andi %34, %36 : vector<1x128xi1>
    %38 = vector.shape_cast %37 : vector<1x128xi1> to vector<1x128xi1>
    %39 = vector.broadcast %38 : vector<1x128xi1> to vector<8x128xi1>
    %40 = vector.shape_cast %27 : vector<8x1xf32> to vector<8x1xf32>
    %41 = vector.broadcast %40 : vector<8x1xf32> to vector<8x128xf32>
    %42 = arith.select %39, %41, %23 : vector<8x128xi1>, vector<8x128xf32>
    %43 = vector.shape_cast %37 : vector<1x128xi1> to vector<1x128xi1>
    %44 = vector.broadcast %43 : vector<1x128xi1> to vector<8x128xi1>
    %45 = vector.shape_cast %32 : vector<8x1xf32> to vector<8x1xf32>
    %46 = vector.broadcast %45 : vector<8x1xf32> to vector<8x128xf32>
    %47 = arith.select %44, %46, %24 : vector<8x128xi1>, vector<8x128xf32>
    %48 = vector.extract_strided_slice %21 {offsets = [0, 8], sizes = [8, 8], strides = [1, 1]} : vector<8x128xf32> to vector<8x8xf32>
    %cst_21 = arith.constant dense<0xFF800000> : vector<8xf32>
    %49 = vector.multi_reduction <maximumf>, %48, %cst_21 [1] : vector<8x8xf32> to vector<8xf32>
    %50 = vector.shape_cast %49 : vector<8xf32> to vector<8x1xf32>
    %51 = vector.broadcast %50 : vector<8x1xf32> to vector<8x8xf32>
    %52 = arith.subf %48, %51 : vector<8x8xf32>
    %53 = math.exp %52 : vector<8x8xf32>
    %cst_22 = arith.constant dense<0.000000e+00> : vector<8xf32>
    %54 = vector.multi_reduction <add>, %53, %cst_22 [1] : vector<8x8xf32> to vector<8xf32>
    %55 = vector.shape_cast %54 : vector<8xf32> to vector<8x1xf32>
    %c8_i32_23 = arith.constant 8 : i32
    %56 = vector.broadcast %c8_i32_23 : i32 to vector<1x128xi32>
    %57 = arith.cmpi sge, %22, %56 : vector<1x128xi32>
    %c16_i32 = arith.constant 16 : i32
    %58 = vector.broadcast %c16_i32 : i32 to vector<1x128xi32>
    %59 = arith.cmpi slt, %22, %58 : vector<1x128xi32>
    %60 = arith.andi %57, %59 : vector<1x128xi1>
    %61 = vector.shape_cast %60 : vector<1x128xi1> to vector<1x128xi1>
    %62 = vector.broadcast %61 : vector<1x128xi1> to vector<8x128xi1>
    %63 = vector.shape_cast %50 : vector<8x1xf32> to vector<8x1xf32>
    %64 = vector.broadcast %63 : vector<8x1xf32> to vector<8x128xf32>
    %65 = arith.select %62, %64, %42 : vector<8x128xi1>, vector<8x128xf32>
    %66 = vector.shape_cast %60 : vector<1x128xi1> to vector<1x128xi1>
    %67 = vector.broadcast %66 : vector<1x128xi1> to vector<8x128xi1>
    %68 = vector.shape_cast %55 : vector<8x1xf32> to vector<8x1xf32>
    %69 = vector.broadcast %68 : vector<8x1xf32> to vector<8x128xf32>
    %70 = arith.select %67, %69, %47 : vector<8x128xi1>, vector<8x128xf32>
    %71 = vector.extract_strided_slice %21 {offsets = [0, 16], sizes = [8, 8], strides = [1, 1]} : vector<8x128xf32> to vector<8x8xf32>
    %cst_24 = arith.constant dense<0xFF800000> : vector<8xf32>
    %72 = vector.multi_reduction <maximumf>, %71, %cst_24 [1] : vector<8x8xf32> to vector<8xf32>
    %73 = vector.shape_cast %72 : vector<8xf32> to vector<8x1xf32>
    %74 = vector.broadcast %73 : vector<8x1xf32> to vector<8x8xf32>
    %75 = arith.subf %71, %74 : vector<8x8xf32>
    %76 = math.exp %75 : vector<8x8xf32>
    %cst_25 = arith.constant dense<0.000000e+00> : vector<8xf32>
    %77 = vector.multi_reduction <add>, %76, %cst_25 [1] : vector<8x8xf32> to vector<8xf32>
    %78 = vector.shape_cast %77 : vector<8xf32> to vector<8x1xf32>
    %c16_i32_26 = arith.constant 16 : i32
    %79 = vector.broadcast %c16_i32_26 : i32 to vector<1x128xi32>
    %80 = arith.cmpi sge, %22, %79 : vector<1x128xi32>
    %c24_i32 = arith.constant 24 : i32
    %81 = vector.broadcast %c24_i32 : i32 to vector<1x128xi32>
    %82 = arith.cmpi slt, %22, %81 : vector<1x128xi32>
    %83 = arith.andi %80, %82 : vector<1x128xi1>
    %84 = vector.shape_cast %83 : vector<1x128xi1> to vector<1x128xi1>
    %85 = vector.broadcast %84 : vector<1x128xi1> to vector<8x128xi1>
    %86 = vector.shape_cast %73 : vector<8x1xf32> to vector<8x1xf32>
    %87 = vector.broadcast %86 : vector<8x1xf32> to vector<8x128xf32>
    %88 = arith.select %85, %87, %65 : vector<8x128xi1>, vector<8x128xf32>
    %89 = vector.shape_cast %83 : vector<1x128xi1> to vector<1x128xi1>
    %90 = vector.broadcast %89 : vector<1x128xi1> to vector<8x128xi1>
    %91 = vector.shape_cast %78 : vector<8x1xf32> to vector<8x1xf32>
    %92 = vector.broadcast %91 : vector<8x1xf32> to vector<8x128xf32>
    %93 = arith.select %90, %92, %70 : vector<8x128xi1>, vector<8x128xf32>
    %94 = vector.extract_strided_slice %21 {offsets = [0, 24], sizes = [8, 8], strides = [1, 1]} : vector<8x128xf32> to vector<8x8xf32>
    %cst_27 = arith.constant dense<0xFF800000> : vector<8xf32>
    %95 = vector.multi_reduction <maximumf>, %94, %cst_27 [1] : vector<8x8xf32> to vector<8xf32>
    %96 = vector.shape_cast %95 : vector<8xf32> to vector<8x1xf32>
    %97 = vector.broadcast %96 : vector<8x1xf32> to vector<8x8xf32>
    %98 = arith.subf %94, %97 : vector<8x8xf32>
    %99 = math.exp %98 : vector<8x8xf32>
    %cst_28 = arith.constant dense<0.000000e+00> : vector<8xf32>
    %100 = vector.multi_reduction <add>, %99, %cst_28 [1] : vector<8x8xf32> to vector<8xf32>
    %101 = vector.shape_cast %100 : vector<8xf32> to vector<8x1xf32>
    %c24_i32_29 = arith.constant 24 : i32
    %102 = vector.broadcast %c24_i32_29 : i32 to vector<1x128xi32>
    %103 = arith.cmpi sge, %22, %102 : vector<1x128xi32>
    %c32_i32 = arith.constant 32 : i32
    %104 = vector.broadcast %c32_i32 : i32 to vector<1x128xi32>
    %105 = arith.cmpi slt, %22, %104 : vector<1x128xi32>
    %106 = arith.andi %103, %105 : vector<1x128xi1>
    %107 = vector.shape_cast %106 : vector<1x128xi1> to vector<1x128xi1>
    %108 = vector.broadcast %107 : vector<1x128xi1> to vector<8x128xi1>
    %109 = vector.shape_cast %96 : vector<8x1xf32> to vector<8x1xf32>
    %110 = vector.broadcast %109 : vector<8x1xf32> to vector<8x128xf32>
    %111 = arith.select %108, %110, %88 : vector<8x128xi1>, vector<8x128xf32>
    %112 = vector.shape_cast %106 : vector<1x128xi1> to vector<1x128xi1>
    %113 = vector.broadcast %112 : vector<1x128xi1> to vector<8x128xi1>
    %114 = vector.shape_cast %101 : vector<8x1xf32> to vector<8x1xf32>
    %115 = vector.broadcast %114 : vector<8x1xf32> to vector<8x128xf32>
    %116 = arith.select %113, %115, %93 : vector<8x128xi1>, vector<8x128xf32>
    %117 = arith.subf %21, %111 : vector<8x128xf32>
    %118 = math.exp %117 : vector<8x128xf32>
    %119 = tpu.reciprocal %116 {approx = true} : vector<8x128xf32> -> vector<8x128xf32>
    %120 = arith.mulf %118, %119 : vector<8x128xf32>
    %c0_30 = arith.constant 0 : index
    %c0_31 = arith.constant 0 : index
    %121 = vector.load %arg8[%c0_30, %c0_31] : memref<8x128xf32, #tpu.memory_space<vmem>>, vector<8x128xf32>
    tpu.vector_store %arg8[%c0_30, %c0_31], %120 {strides = array<i32>} : memref<8x128xf32, #tpu.memory_space<vmem>>, vector<8x128xf32>,
    return
  }
  func.func @transform_0(%arg0: i32) -> (i32, i32) {
    %c0_i32 = arith.constant 0 : i32
    %c0_i32_0 = arith.constant 0 : i32
    return %arg0, %c0_i32 : i32, i32
  }
  func.func @transform_1(%arg0: i32) -> (i32, i32) {
    %c0_i32 = arith.constant 0 : i32
    %c0_i32_0 = arith.constant 0 : i32
    %c0_i32_1 = arith.constant 0 : i32
    return %c0_i32, %c0_i32_0 : i32, i32
  }
  func.func @transform_2(%arg0: i32) -> (i32, i32) {
    %c0_i32 = arith.constant 0 : i32
    %c0_i32_0 = arith.constant 0 : i32
    %c0_i32_1 = arith.constant 0 : i32
    return %c0_i32, %c0_i32_0 : i32, i32
  }
  func.func @transform_3(%arg0: i32) -> (i32, i32) {
    %c0_i32 = arith.constant 0 : i32
    %c0_i32_0 = arith.constant 0 : i32
    %c0_i32_1 = arith.constant 0 : i32
    return %c0_i32, %c0_i32_0 : i32, i32
  }
  func.func @transform_4(%arg0: i32) -> (i32, i32) {
    %c0_i32 = arith.constant 0 : i32
    %c0_i32_0 = arith.constant 0 : i32
    %c0_i32_1 = arith.constant 0 : i32
    return %c0_i32, %c0_i32_0 : i32, i32
  }
  func.func @transform_5(%arg0: i32) -> (i32, i32) {
    %c0_i32 = arith.constant 0 : i32
    %c0_i32_0 = arith.constant 0 : i32
    %c0_i32_1 = arith.constant 0 : i32
    return %c0_i32, %c0_i32_0 : i32, i32
  }
  func.func @transform_6(%arg0: i32) -> (i32, i32) {
    %c0_i32 = arith.constant 0 : i32
    %c0_i32_0 = arith.constant 0 : i32
    %c0_i32_1 = arith.constant 0 : i32
    return %c0_i32, %c0_i32_0 : i32, i32
  }
  func.func @transform_7(%arg0: i32) -> (i32, i32) {
    %c0_i32 = arith.constant 0 : i32
    %c0_i32_0 = arith.constant 0 : i32
    return %arg0, %c0_i32 : i32, i32
  }
}

</mosaic_0001>

<llo_original>
// kernel: tpu_custom_call.1
$region0: #{tpu_custom_call.1}
  #allocation0 [shape = 'u32[]', space=smem, size = 0x4, offset = 0x4, fixed_abs, tag = 'smem constant byte address 0x4 - core index']
  #allocation1 [shape = 'u32[144,128]{1,0:T(1,128)}', space=vmem, size = 0x12000, scoped, tag = 'internal scratch']
  %s0 = inlined_call_operand.hbm [shape: bf16[8,400], index: 0, kind: input, shape index: {}]
  %s1 = inlined_call_operand.hbm [shape: bf16[400,1024], index: 1, kind: input, shape index: {}]
  %s2 = inlined_call_operand.hbm [shape: f32[1,1024], index: 2, kind: input, shape index: {}]
  %s3 = inlined_call_operand.hbm [shape: bf16[1024,128], index: 3, kind: input, shape index: {}]
  %s4 = inlined_call_operand.vmem [shape: f32[1,128], index: 4, kind: input, shape index: {}]
  %s5 = inlined_call_operand.hbm [shape: bf16[128,128], index: 5, kind: input, shape index: {}]
  %s6 = inlined_call_operand.vmem [shape: f32[1,128], index: 6, kind: input, shape index: {}]
  %s7 = inlined_call_operand.hbm [shape: f32[8,128], index: 7, kind: output, shape index: {}]
  %s8 = sld [smem:[#allocation0]]
  $region58: #{tpu_custom_call.1} parent=0
    _
  %s10 = ssub.s32 1, %s8
  %s11 = scalar_select 0, %s10, %s8
  $region1: #{tpu_custom_call.1} parent=0
    #allocation2 [shape = 'u8[8192]{0}', space=vmem, size = 0x2000, scoped, tag = 'input window, operand 0, single buffered']
    #allocation3 [shape = 's32[1]{0}', space=sflag, size = 0x4, scoped, tag = 'scoped memory for tpu_custom_call.1']
    #allocation4 [shape = 's32[1]{0}', space=sflag, size = 0x4, scoped, tag = 'scoped memory for tpu_custom_call.1']
    #allocation5 [shape = 'u8[819200]{0}', space=vmem, size = 0xc8000, scoped, tag = 'input window, operand 1, single buffered']
    #allocation6 [shape = 's32[1]{0}', space=sflag, size = 0x4, scoped, tag = 'scoped memory for tpu_custom_call.1']
    #allocation7 [shape = 'u8[4096]{0}', space=vmem, size = 0x1000, scoped, tag = 'input window, operand 2, single buffered']
    #allocation8 [shape = 'u8[262144]{0}', space=vmem, size = 0x40000, scoped, tag = 'input window, operand 3, single buffered']
    #allocation9 [shape = 's32[1]{0}', space=sflag, size = 0x4, scoped, tag = 'scoped memory for tpu_custom_call.1']
    #allocation10 [shape = 'u8[32768]{0}', space=vmem, size = 0x8000, scoped, tag = 'input window, operand 5, single buffered']
    #allocation11 [shape = 'u8[4096]{0}', space=vmem, size = 0x1000, scoped, tag = 'output window, operand 0, single buffered']
    %12 = vsyncpa [#allocation3], 0
    %13 = vsyncpa [#allocation6], 0
    %14 = vsyncpa [#allocation9], 0
    %15 = vsyncpa [#allocation4], 0
    // Predicated region
    $region2: #{tpu_custom_call.1} parent=1 // pred_check
      _
    $region3: #{tpu_custom_call.1} parent=1 // pred_check_branch
      %17 = sbr.rel (0) target = $region5
    $region4: #{tpu_custom_call.1} parent=1 // pred_region
      %s19 = ssub.s32 256, 256
      %20 = vsyncadd [#allocation3], %s19
      %s22 = sshll.u32 [#allocation2], 4
      %s23 = int_to_ptr.vmem [resolvable:$true] %s22
      %25 = dma.hbm_to_vmem [thread:$0]  %s0, 256, %s23, [#allocation3]
    $region5: #{tpu_custom_call.1} parent=1 // pred_fallthru
      _
    // Predicated region
    $region6: #{tpu_custom_call.1} parent=1 // pred_check
      _
    $region7: #{tpu_custom_call.1} parent=1 // pred_check_branch
      %27 = sbr.rel (0) target = $region9
    $region8: #{tpu_custom_call.1} parent=1 // pred_region
      %s29 = ssub.s32 25600, 25600
      %30 = vsyncadd [#allocation6], %s29
      %s31 = sshll.u32 [#allocation5], 4
      %s32 = int_to_ptr.vmem [resolvable:$true] %s31
      %37 = dma.hbm_to_vmem [thread:$0]  %s1, 25600, %s32, [#allocation6], 512, 512, 32
    $region9: #{tpu_custom_call.1} parent=1 // pred_fallthru
      _
    // Predicated region
    $region10: #{tpu_custom_call.1} parent=1 // pred_check
      _
    $region11: #{tpu_custom_call.1} parent=1 // pred_check_branch
      %39 = sbr.rel (0) target = $region13
    $region12: #{tpu_custom_call.1} parent=1 // pred_region
      %s41 = ssub.s32 128, 128
      %42 = vsyncadd [#allocation6], %s41
      %s44 = sshll.u32 [#allocation7], 4
      %s45 = int_to_ptr.vmem [resolvable:$true] %s44
      %47 = dma.hbm_to_vmem [thread:$0]  %s2, 128, %s45, [#allocation6]
    $region13: #{tpu_custom_call.1} parent=1 // pred_fallthru
      _
    // Predicated region
    $region14: #{tpu_custom_call.1} parent=1 // pred_check
      _
    $region15: #{tpu_custom_call.1} parent=1 // pred_check_branch
      %49 = sbr.rel (0) target = $region17
    $region16: #{tpu_custom_call.1} parent=1 // pred_region
      %s51 = ssub.s32 8192, 8192
      %52 = vsyncadd [#allocation9], %s51
      %s53 = sshll.u32 [#allocation8], 4
      %s54 = int_to_ptr.vmem [resolvable:$true] %s53
      %59 = dma.hbm_to_vmem [thread:$0]  %s3, 8192, %s54, [#allocation9], 64, 64, 4
    $region17: #{tpu_custom_call.1} parent=1 // pred_fallthru
      _
    // Predicated region
    $region18: #{tpu_custom_call.1} parent=1 // pred_check
      _
    $region19: #{tpu_custom_call.1} parent=1 // pred_check_branch
      %61 = sbr.rel (0) target = $region21
    $region20: #{tpu_custom_call.1} parent=1 // pred_region
      _
    $region21: #{tpu_custom_call.1} parent=1 // pred_fallthru
      _
    // Predicated region
    $region22: #{tpu_custom_call.1} parent=1 // pred_check
      _
    $region23: #{tpu_custom_call.1} parent=1 // pred_check_branch
      %63 = sbr.rel (0) target = $region25
    $region24: #{tpu_custom_call.1} parent=1 // pred_region
      %s65 = ssub.s32 1024, 1024
      %66 = vsyncadd [#allocation9], %s65
      %s67 = sshll.u32 [#allocation10], 4
      %s68 = int_to_ptr.vmem [resolvable:$true] %s67
      %73 = dma.hbm_to_vmem [thread:$0]  %s5, 1024, %s68, [#allocation9], 64, 64, 4
    $region25: #{tpu_custom_call.1} parent=1 // pred_fallthru
      _
    // Predicated region
    $region26: #{tpu_custom_call.1} parent=1 // pred_check
      _
    $region27: #{tpu_custom_call.1} parent=1 // pred_check_branch
      %75 = sbr.rel (0) target = $region29
    $region28: #{tpu_custom_call.1} parent=1 // pred_region
      _
    $region29: #{tpu_custom_call.1} parent=1 // pred_fallthru
      _
    // Predicated region
    $region30: #{tpu_custom_call.1} parent=1 // pred_check
      _
    $region31: #{tpu_custom_call.1} parent=1 // pred_check_branch
      %77 = sbr.rel (0) target = $region33
    $region32: #{tpu_custom_call.1} parent=1 // pred_region
      %78 = dma.done [#allocation3], 256
    $region33: #{tpu_custom_call.1} parent=1 // pred_fallthru
      _
    // Predicated region
    $region34: #{tpu_custom_call.1} parent=1 // pred_check
      _
    $region35: #{tpu_custom_call.1} parent=1 // pred_check_branch
      %80 = sbr.rel (0) target = $region37
    $region36: #{tpu_custom_call.1} parent=1 // pred_region
      %81 = dma.done [#allocation6], 25600
    $region37: #{tpu_custom_call.1} parent=1 // pred_fallthru
      _
    // Predicated region
    $region38: #{tpu_custom_call.1} parent=1 // pred_check
      _
    $region39: #{tpu_custom_call.1} parent=1 // pred_check_branch
      %83 = sbr.rel (0) target = $region41
    $region40: #{tpu_custom_call.1} parent=1 // pred_region
      %84 = dma.done [#allocation6], 128
    $region41: #{tpu_custom_call.1} parent=1 // pred_fallthru
      _
    // Predicated region
    $region42: #{tpu_custom_call.1} parent=1 // pred_check
      _
    $region43: #{tpu_custom_call.1} parent=1 // pred_check_branch
      %86 = sbr.rel (0) target = $region45
    $region44: #{tpu_custom_call.1} parent=1 // pred_region
      %87 = dma.done [#allocation9], 8192
    $region45: #{tpu_custom_call.1} parent=1 // pred_fallthru
      _
    // Predicated region
    $region46: #{tpu_custom_call.1} parent=1 // pred_check
      _
    $region47: #{tpu_custom_call.1} parent=1 // pred_check_branch
      %89 = sbr.rel (0) target = $region49
    $region48: #{tpu_custom_call.1} parent=1 // pred_region
      %90 = dma.done [#allocation9], 1024
    $region49: #{tpu_custom_call.1} parent=1 // pred_fallthru
      _
    %v92 = vld [vmem:[#allocation2] sm:$0xff]
    %v93 = vld [vmem:[#allocation2 + $0x8] sm:$0xff]
    %v94 = vld [vmem:[#allocation5] sm:$0xff]
    %v95 = vld [vmem:[#allocation5 + $0x8] sm:$0xff]
    %v96 = vld [vmem:[#allocation5 + $0x10] sm:$0xff]
    %v97 = vld [vmem:[#allocation5 + $0x18] sm:$0xff]
    %v98 = vld [vmem:[#allocation5 + $0x20] sm:$0xff]
    %v99 = vld [vmem:[#allocation5 + $0x28] sm:$0xff]
    %v100 = vld [vmem:[#allocation5 + $0x30] sm:$0xff]
    %v101 = vld [vmem:[#allocation5 + $0x38] sm:$0xff]
    %v102 = vld [vmem:[#allocation5 + $0x40] sm:$0xff]
    %v103 = vld [vmem:[#allocation5 + $0x48] sm:$0xff]
    %v104 = vld [vmem:[#allocation5 + $0x50] sm:$0xff]
    %v105 = vld [vmem:[#allocation5 + $0x58] sm:$0xff]
    %v106 = vld [vmem:[#allocation5 + $0x60] sm:$0xff]
    %v107 = vld [vmem:[#allocation5 + $0x68] sm:$0xff]
    %v108 = vld [vmem:[#allocation5 + $0x70] sm:$0xff]
    %v109 = vld [vmem:[#allocation5 + $0x78] sm:$0xff]
    %v110 = vld [vmem:[#allocation5 + $0x80] sm:$0xff]
    %v111 = vld [vmem:[#allocation5 + $0x88] sm:$0xff]
    %v112 = vld [vmem:[#allocation5 + $0x90] sm:$0xff]
    %v113 = vld [vmem:[#allocation5 + $0x98] sm:$0xff]
    %v114 = vld [vmem:[#allocation5 + $0xa0] sm:$0xff]
    %v115 = vld [vmem:[#allocation5 + $0xa8] sm:$0xff]
    %v116 = vld [vmem:[#allocation5 + $0xb0] sm:$0xff]
    %v117 = vld [vmem:[#allocation5 + $0xb8] sm:$0xff]
    %v118 = vld [vmem:[#allocation5 + $0xc0] sm:$0xff]
    %v119 = vld [vmem:[#allocation5 + $0xc8] sm:$0xff]
    %v120 = vld [vmem:[#allocation5 + $0xd0] sm:$0xff]
    %v121 = vld [vmem:[#allocation5 + $0xd8] sm:$0xff]
    %v122 = vld [vmem:[#allocation5 + $0xe0] sm:$0xff]
    %v123 = vld [vmem:[#allocation5 + $0xe8] sm:$0xff]
    %v124 = vld [vmem:[#allocation5 + $0xf0] sm:$0xff]
    %v125 = vld [vmem:[#allocation5 + $0xf8] sm:$0xff]
    %v126 = vld [vmem:[#allocation5 + $0x100] sm:$0xff]
    %v127 = vld [vmem:[#allocation5 + $0x108] sm:$0xff]
    %v128 = vld [vmem:[#allocation5 + $0x110] sm:$0xff]
    %v129 = vld [vmem:[#allocation5 + $0x118] sm:$0xff]
    %v130 = vld [vmem:[#allocation5 + $0x120] sm:$0xff]
    %v131 = vld [vmem:[#allocation5 + $0x128] sm:$0xff]
    %v132 = vld [vmem:[#allocation5 + $0x130] sm:$0xff]
    %v133 = vld [vmem:[#allocation5 + $0x138] sm:$0xff]
    %v134 = vld [vmem:[#allocation5 + $0x140] sm:$0xff]
    %v135 = vld [vmem:[#allocation5 + $0x148] sm:$0xff]
    %v136 = vld [vmem:[#allocation5 + $0x150] sm:$0xff]
    %v137 = vld [vmem:[#allocation5 + $0x158] sm:$0xff]
    %v138 = vld [vmem:[#allocation5 + $0x160] sm:$0xff]
    %v139 = vld [vmem:[#allocation5 + $0x168] sm:$0xff]
    %v140 = vld [vmem:[#allocation5 + $0x170] sm:$0xff]
    %v141 = vld [vmem:[#allocation5 + $0x178] sm:$0xff]
    %v142 = vld [vmem:[#allocation5 + $0x180] sm:$0xff]
    %v143 = vld [vmem:[#allocation5 + $0x188] sm:$0xff]
    %v144 = vld [vmem:[#allocation5 + $0x190] sm:$0xff]
    %v145 = vld [vmem:[#allocation5 + $0x198] sm:$0xff]
    %v146 = vld [vmem:[#allocation5 + $0x1a0] sm:$0xff]
    %v147 = vld [vmem:[#allocation5 + $0x1a8] sm:$0xff]
    %v148 = vld [vmem:[#allocation5 + $0x1b0] sm:$0xff]
    %v149 = vld [vmem:[#allocation5 + $0x1b8] sm:$0xff]
    %v150 = vld [vmem:[#allocation5 + $0x1c0] sm:$0xff]
    %v151 = vld [vmem:[#allocation5 + $0x1c8] sm:$0xff]
    %v152 = vld [vmem:[#allocation5 + $0x1d0] sm:$0xff]
    %v153 = vld [vmem:[#allocation5 + $0x1d8] sm:$0xff]
    %v154 = vld [vmem:[#allocation5 + $0x1e0] sm:$0xff]
    %v155 = vld [vmem:[#allocation5 + $0x1e8] sm:$0xff]
    %v156 = vld [vmem:[#allocation5 + $0x1f0] sm:$0xff]
    %v157 = vld [vmem:[#allocation5 + $0x1f8] sm:$0xff]
    %v158 = vld [vmem:[#allocation5 + $0x200] sm:$0xff]
    %v159 = vld [vmem:[#allocation5 + $0x208] sm:$0xff]
    %v160 = vld [vmem:[#allocation5 + $0x210] sm:$0xff]
    %v161 = vld [vmem:[#allocation5 + $0x218] sm:$0xff]
    %v162 = vld [vmem:[#allocation5 + $0x220] sm:$0xff]
    %v163 = vld [vmem:[#allocation5 + $0x228] sm:$0xff]
    %v164 = vld [vmem:[#allocation5 + $0x230] sm:$0xff]
    %v165 = vld [vmem:[#allocation5 + $0x238] sm:$0xff]
    %v166 = vld [vmem:[#allocation5 + $0x240] sm:$0xff]
    %v167 = vld [vmem:[#allocation5 + $0x248] sm:$0xff]
    %v168 = vld [vmem:[#allocation5 + $0x250] sm:$0xff]
    %v169 = vld [vmem:[#allocation5 + $0x258] sm:$0xff]
    %v170 = vld [vmem:[#allocation5 + $0x260] sm:$0xff]
    %v171 = vld [vmem:[#allocation5 + $0x268] sm:$0xff]
    %v172 = vld [vmem:[#allocation5 + $0x270] sm:$0xff]
    %v173 = vld [vmem:[#allocation5 + $0x278] sm:$0xff]
    %v174 = vld [vmem:[#allocation5 + $0x280] sm:$0xff]
    %v175 = vld [vmem:[#allocation5 + $0x288] sm:$0xff]
    %v176 = vld [vmem:[#allocation5 + $0x290] sm:$0xff]
    %v177 = vld [vmem:[#allocation5 + $0x298] sm:$0xff]
    %v178 = vld [vmem:[#allocation5 + $0x2a0] sm:$0xff]
    %v179 = vld [vmem:[#allocation5 + $0x2a8] sm:$0xff]
    %v180 = vld [vmem:[#allocation5 + $0x2b0] sm:$0xff]
    %v181 = vld [vmem:[#allocation5 + $0x2b8] sm:$0xff]
    %v182 = vld [vmem:[#allocation5 + $0x2c0] sm:$0xff]
    %v183 = vld [vmem:[#allocation5 + $0x2c8] sm:$0xff]
    %v184 = vld [vmem:[#allocation5 + $0x2d0] sm:$0xff]
    %v185 = vld [vmem:[#allocation5 + $0x2d8] sm:$0xff]
    %v186 = vld [vmem:[#allocation5 + $0x2e0] sm:$0xff]
    %v187 = vld [vmem:[#allocation5 + $0x2e8] sm:$0xff]
    %v188 = vld [vmem:[#allocation5 + $0x2f0] sm:$0xff]
    %v189 = vld [vmem:[#allocation5 + $0x2f8] sm:$0xff]
    %v190 = vld [vmem:[#allocation5 + $0x300] sm:$0xff]
    %v191 = vld [vmem:[#allocation5 + $0x308] sm:$0xff]
    %v192 = vld [vmem:[#allocation5 + $0x310] sm:$0xff]
    %v193 = vld [vmem:[#allocation5 + $0x318] sm:$0xff]
    %v194 = vld [vmem:[#allocation5 + $0x320] sm:$0xff]
    %v195 = vld [vmem:[#allocation5 + $0x328] sm:$0xff]
    %v196 = vld [vmem:[#allocation5 + $0x330] sm:$0xff]
    %v197 = vld [vmem:[#allocation5 + $0x338] sm:$0xff]
    %v198 = vld [vmem:[#allocation5 + $0x340] sm:$0xff]
    %v199 = vld [vmem:[#allocation5 + $0x348] sm:$0xff]
    %v200 = vld [vmem:[#allocation5 + $0x350] sm:$0xff]
    %v201 = vld [vmem:[#allocation5 + $0x358] sm:$0xff]
    %v202 = vld [vmem:[#allocation5 + $0x360] sm:$0xff]
    %v203 = vld [vmem:[#allocation5 + $0x368] sm:$0xff]
    %v204 = vld [vmem:[#allocation5 + $0x370] sm:$0xff]
    %v205 = vld [vmem:[#allocation5 + $0x378] sm:$0xff]
    %v206 = vld [vmem:[#allocation5 + $0x380] sm:$0xff]
    %v207 = vld [vmem:[#allocation5 + $0x388] sm:$0xff]
    %v208 = vld [vmem:[#allocation5 + $0x390] sm:$0xff]
    %v209 = vld [vmem:[#allocation5 + $0x398] sm:$0xff]
    %v210 = vld [vmem:[#allocation5 + $0x3a0] sm:$0xff]
    %v211 = vld [vmem:[#allocation5 + $0x3a8] sm:$0xff]
    %v212 = vld [vmem:[#allocation5 + $0x3b0] sm:$0xff]
    %v213 = vld [vmem:[#allocation5 + $0x3b8] sm:$0xff]
    %v214 = vld [vmem:[#allocation5 + $0x3c0] sm:$0xff]
    %v215 = vld [vmem:[#allocation5 + $0x3c8] sm:$0xff]
    %v216 = vld [vmem:[#allocation5 + $0x3d0] sm:$0xff]
    %v217 = vld [vmem:[#allocation5 + $0x3d8] sm:$0xff]
    %v218 = vld [vmem:[#allocation5 + $0x3e0] sm:$0xff]
    %v219 = vld [vmem:[#allocation5 + $0x3e8] sm:$0xff]
    %v220 = vld [vmem:[#allocation5 + $0x3f0] sm:$0xff]
    %v221 = vld [vmem:[#allocation5 + $0x3f8] sm:$0xff]
    %v222 = vld [vmem:[#allocation5 + $0x400] sm:$0xff]
    %v223 = vld [vmem:[#allocation5 + $0x408] sm:$0xff]
    %v224 = vld [vmem:[#allocation5 + $0x410] sm:$0xff]
    %v225 = vld [vmem:[#allocation5 + $0x418] sm:$0xff]
    %v226 = vld [vmem:[#allocation5 + $0x420] sm:$0xff]
    %v227 = vld [vmem:[#allocation5 + $0x428] sm:$0xff]
    %v228 = vld [vmem:[#allocation5 + $0x430] sm:$0xff]
    %v229 = vld [vmem:[#allocation5 + $0x438] sm:$0xff]
    %v230 = vld [vmem:[#allocation5 + $0x440] sm:$0xff]
    %v231 = vld [vmem:[#allocation5 + $0x448] sm:$0xff]
    %v232 = vld [vmem:[#allocation5 + $0x450] sm:$0xff]
    %v233 = vld [vmem:[#allocation5 + $0x458] sm:$0xff]
    %v234 = vld [vmem:[#allocation5 + $0x460] sm:$0xff]
    %v235 = vld [vmem:[#allocation5 + $0x468] sm:$0xff]
    %v236 = vld [vmem:[#allocation5 + $0x470] sm:$0xff]
    %v237 = vld [vmem:[#allocation5 + $0x478] sm:$0xff]
    %v238 = vld [vmem:[#allocation5 + $0x480] sm:$0xff]
    %v239 = vld [vmem:[#allocation5 + $0x488] sm:$0xff]
    %v240 = vld [vmem:[#allocation5 + $0x490] sm:$0xff]
    %v241 = vld [vmem:[#allocation5 + $0x498] sm:$0xff]
    %v242 = vld [vmem:[#allocation5 + $0x4a0] sm:$0xff]
    %v243 = vld [vmem:[#allocation5 + $0x4a8] sm:$0xff]
    %v244 = vld [vmem:[#allocation5 + $0x4b0] sm:$0xff]
    %v245 = vld [vmem:[#allocation5 + $0x4b8] sm:$0xff]
    %v246 = vld [vmem:[#allocation5 + $0x4c0] sm:$0xff]
    %v247 = vld [vmem:[#allocation5 + $0x4c8] sm:$0xff]
    %v248 = vld [vmem:[#allocation5 + $0x4d0] sm:$0xff]
    %v249 = vld [vmem:[#allocation5 + $0x4d8] sm:$0xff]
    %v250 = vld [vmem:[#allocation5 + $0x4e0] sm:$0xff]
    %v251 = vld [vmem:[#allocation5 + $0x4e8] sm:$0xff]
    %v252 = vld [vmem:[#allocation5 + $0x4f0] sm:$0xff]
    %v253 = vld [vmem:[#allocation5 + $0x4f8] sm:$0xff]
    %v254 = vld [vmem:[#allocation5 + $0x500] sm:$0xff]
    %v255 = vld [vmem:[#allocation5 + $0x508] sm:$0xff]
    %v256 = vld [vmem:[#allocation5 + $0x510] sm:$0xff]
    %v257 = vld [vmem:[#allocation5 + $0x518] sm:$0xff]
    %v258 = vld [vmem:[#allocation5 + $0x520] sm:$0xff]
    %v259 = vld [vmem:[#allocation5 + $0x528] sm:$0xff]
    %v260 = vld [vmem:[#allocation5 + $0x530] sm:$0xff]
    %v261 = vld [vmem:[#allocation5 + $0x538] sm:$0xff]
    %v262 = vld [vmem:[#allocation5 + $0x540] sm:$0xff]
    %v263 = vld [vmem:[#allocation5 + $0x548] sm:$0xff]
    %v264 = vld [vmem:[#allocation5 + $0x550] sm:$0xff]
    %v265 = vld [vmem:[#allocation5 + $0x558] sm:$0xff]
    %v266 = vld [vmem:[#allocation5 + $0x560] sm:$0xff]
    %v267 = vld [vmem:[#allocation5 + $0x568] sm:$0xff]
    %v268 = vld [vmem:[#allocation5 + $0x570] sm:$0xff]
    %v269 = vld [vmem:[#allocation5 + $0x578] sm:$0xff]
    %v270 = vld [vmem:[#allocation5 + $0x580] sm:$0xff]
    %v271 = vld [vmem:[#allocation5 + $0x588] sm:$0xff]
    %v272 = vld [vmem:[#allocation5 + $0x590] sm:$0xff]
    %v273 = vld [vmem:[#allocation5 + $0x598] sm:$0xff]
    %v274 = vld [vmem:[#allocation5 + $0x5a0] sm:$0xff]
    %v275 = vld [vmem:[#allocation5 + $0x5a8] sm:$0xff]
    %v276 = vld [vmem:[#allocation5 + $0x5b0] sm:$0xff]
    %v277 = vld [vmem:[#allocation5 + $0x5b8] sm:$0xff]
    %v278 = vld [vmem:[#allocation5 + $0x5c0] sm:$0xff]
    %v279 = vld [vmem:[#allocation5 + $0x5c8] sm:$0xff]
    %v280 = vld [vmem:[#allocation5 + $0x5d0] sm:$0xff]
    %v281 = vld [vmem:[#allocation5 + $0x5d8] sm:$0xff]
    %v282 = vld [vmem:[#allocation5 + $0x5e0] sm:$0xff]
    %v283 = vld [vmem:[#allocation5 + $0x5e8] sm:$0xff]
    %v284 = vld [vmem:[#allocation5 + $0x5f0] sm:$0xff]
    %v285 = vld [vmem:[#allocation5 + $0x5f8] sm:$0xff]
    %v286 = vld [vmem:[#allocation5 + $0x600] sm:$0xff]
    %v287 = vld [vmem:[#allocation5 + $0x608] sm:$0xff]
    %v288 = vld [vmem:[#allocation5 + $0x610] sm:$0xff]
    %v289 = vld [vmem:[#allocation5 + $0x618] sm:$0xff]
    %v290 = vld [vmem:[#allocation5 + $0x620] sm:$0xff]
    %v291 = vld [vmem:[#allocation5 + $0x628] sm:$0xff]
    %v292 = vld [vmem:[#allocation5 + $0x630] sm:$0xff]
    %v293 = vld [vmem:[#allocation5 + $0x638] sm:$0xff]
    %v294 = vld [vmem:[#allocation7] sm:$0xff]
    %v296 = vlaneseq
    %v297 = vshrl.u32 %v296, 7
    %v298 = vsub.s32 0, %v297
    %v299 = vrot.slane %v294, %v298
    %v300 = vlaneseq
    %v301 = vshrl.u32 %v300, 7
    %v302 = vsub.s32 1, %v301
    %v303 = vrot.slane %v294, %v302
    %v304 = vlaneseq
    %v305 = vshrl.u32 %v304, 7
    %v306 = vsub.s32 2, %v305
    %v307 = vrot.slane %v294, %v306
    %v308 = vlaneseq
    %v309 = vshrl.u32 %v308, 7
    %v310 = vsub.s32 3, %v309
    %v311 = vrot.slane %v294, %v310
    %v312 = vlaneseq
    %v313 = vshrl.u32 %v312, 7
    %v314 = vsub.s32 4, %v313
    %v315 = vrot.slane %v294, %v314
    %v316 = vlaneseq
    %v317 = vshrl.u32 %v316, 7
    %v318 = vsub.s32 5, %v317
    %v319 = vrot.slane %v294, %v318
    %v320 = vlaneseq
    %v321 = vshrl.u32 %v320, 7
    %v322 = vsub.s32 6, %v321
    %v323 = vrot.slane %v294, %v322
    %v324 = vlaneseq
    %v325 = vshrl.u32 %v324, 7
    %v326 = vsub.s32 7, %v325
    %v327 = vrot.slane %v294, %v326
    %v338 = vunpack.c.l.b16 %v92
    %v339 = vunpack.c.h.b16 %v92
    %v340 = vunpack.c.l.b16 %v93
    %v341 = vunpack.c.h.b16 %v93
    %v342 = vpack.c.b16 %v338, %v338
    %v343 = vpack.c.b16 %v339, %v339
    %v344 = vpack.c.b16 %v340, %v340
    %v345 = vpack.c.b16 %v341, %v341
    %v549 = vunpack.c.l.b16 %v94
    %v550 = vunpack.c.h.b16 %v94
    %v551 = vunpack.c.l.b16 %v95
    %v552 = vunpack.c.h.b16 %v95
    %v553 = vunpack.c.l.b16 %v96
    %v554 = vunpack.c.h.b16 %v96
    %v555 = vunpack.c.l.b16 %v97
    %v556 = vunpack.c.h.b16 %v97
    %v557 = vunpack.c.l.b16 %v98
    %v558 = vunpack.c.h.b16 %v98
    %v559 = vunpack.c.l.b16 %v99
    %v560 = vunpack.c.h.b16 %v99
    %v561 = vunpack.c.l.b16 %v100
    %v562 = vunpack.c.h.b16 %v100
    %v563 = vunpack.c.l.b16 %v101
    %v564 = vunpack.c.h.b16 %v101
    %v565 = vunpack.c.l.b16 %v102
    %v566 = vunpack.c.h.b16 %v102
    %v567 = vunpack.c.l.b16 %v103
    %v568 = vunpack.c.h.b16 %v103
    %v569 = vunpack.c.l.b16 %v104
    %v570 = vunpack.c.h.b16 %v104
    %v571 = vunpack.c.l.b16 %v105
    %v572 = vunpack.c.h.b16 %v105
    %v573 = vunpack.c.l.b16 %v106
    %v574 = vunpack.c.h.b16 %v106
    %v575 = vunpack.c.l.b16 %v107
    %v576 = vunpack.c.h.b16 %v107
    %v577 = vunpack.c.l.b16 %v108
    %v578 = vunpack.c.h.b16 %v108
    %v579 = vunpack.c.l.b16 %v109
    %v580 = vunpack.c.h.b16 %v109
    %v581 = vunpack.c.l.b16 %v110
    %v582 = vunpack.c.h.b16 %v110
    %v583 = vunpack.c.l.b16 %v111
    %v584 = vunpack.c.h.b16 %v111
    %v585 = vunpack.c.l.b16 %v112
    %v586 = vunpack.c.h.b16 %v112
    %v587 = vunpack.c.l.b16 %v113
    %v588 = vunpack.c.h.b16 %v113
    %v589 = vunpack.c.l.b16 %v114
    %v590 = vunpack.c.h.b16 %v114
    %v591 = vunpack.c.l.b16 %v115
    %v592 = vunpack.c.h.b16 %v115
    %v593 = vunpack.c.l.b16 %v116
    %v594 = vunpack.c.h.b16 %v116
    %v595 = vunpack.c.l.b16 %v117
    %v596 = vunpack.c.h.b16 %v117
    %v597 = vunpack.c.l.b16 %v118
    %v598 = vunpack.c.h.b16 %v118
    %v599 = vunpack.c.l.b16 %v119
    %v600 = vunpack.c.h.b16 %v119
    %v601 = vunpack.c.l.b16 %v120
    %v602 = vunpack.c.h.b16 %v120
    %v603 = vunpack.c.l.b16 %v121
    %v604 = vunpack.c.h.b16 %v121
    %v605 = vunpack.c.l.b16 %v122
    %v606 = vunpack.c.h.b16 %v122
    %v607 = vunpack.c.l.b16 %v123
    %v608 = vunpack.c.h.b16 %v123
    %v609 = vunpack.c.l.b16 %v124
    %v610 = vunpack.c.h.b16 %v124
    %v611 = vunpack.c.l.b16 %v125
    %v612 = vunpack.c.h.b16 %v125
    %v613 = vunpack.c.l.b16 %v126
    %v614 = vunpack.c.h.b16 %v126
    %v615 = vunpack.c.l.b16 %v127
    %v616 = vunpack.c.h.b16 %v127
    %v617 = vunpack.c.l.b16 %v128
    %v618 = vunpack.c.h.b16 %v128
    %v619 = vunpack.c.l.b16 %v129
    %v620 = vunpack.c.h.b16 %v129
    %v621 = vunpack.c.l.b16 %v130
    %v622 = vunpack.c.h.b16 %v130
    %v623 = vunpack.c.l.b16 %v131
    %v624 = vunpack.c.h.b16 %v131
    %v625 = vunpack.c.l.b16 %v132
    %v626 = vunpack.c.h.b16 %v132
    %v627 = vunpack.c.l.b16 %v133
    %v628 = vunpack.c.h.b16 %v133
    %v629 = vunpack.c.l.b16 %v134
    %v630 = vunpack.c.h.b16 %v134
    %v631 = vunpack.c.l.b16 %v135
    %v632 = vunpack.c.h.b16 %v135
    %v633 = vunpack.c.l.b16 %v136
    %v634 = vunpack.c.h.b16 %v136
    %v635 = vunpack.c.l.b16 %v137
    %v636 = vunpack.c.h.b16 %v137
    %v637 = vunpack.c.l.b16 %v138
    %v638 = vunpack.c.h.b16 %v138
    %v639 = vunpack.c.l.b16 %v139
    %v640 = vunpack.c.h.b16 %v139
    %v641 = vunpack.c.l.b16 %v140
    %v642 = vunpack.c.h.b16 %v140
    %v643 = vunpack.c.l.b16 %v141
    %v644 = vunpack.c.h.b16 %v141
    %v645 = vunpack.c.l.b16 %v142
    %v646 = vunpack.c.h.b16 %v142
    %v647 = vunpack.c.l.b16 %v143
    %v648 = vunpack.c.h.b16 %v143
    %v649 = vunpack.c.l.b16 %v144
    %v650 = vunpack.c.h.b16 %v144
    %v651 = vunpack.c.l.b16 %v145
    %v652 = vunpack.c.h.b16 %v145
    %v653 = vunpack.c.l.b16 %v146
    %v654 = vunpack.c.h.b16 %v146
    %v655 = vunpack.c.l.b16 %v147
    %v656 = vunpack.c.h.b16 %v147
    %v657 = vunpack.c.l.b16 %v148
    %v658 = vunpack.c.h.b16 %v148
    %v659 = vunpack.c.l.b16 %v149
    %v660 = vunpack.c.h.b16 %v149
    %v661 = vunpack.c.l.b16 %v150
    %v662 = vunpack.c.h.b16 %v150
    %v663 = vunpack.c.l.b16 %v151
    %v664 = vunpack.c.h.b16 %v151
    %v665 = vunpack.c.l.b16 %v152
    %v666 = vunpack.c.h.b16 %v152
    %v667 = vunpack.c.l.b16 %v153
    %v668 = vunpack.c.h.b16 %v153
    %v669 = vunpack.c.l.b16 %v154
    %v670 = vunpack.c.h.b16 %v154
    %v671 = vunpack.c.l.b16 %v155
    %v672 = vunpack.c.h.b16 %v155
    %v673 = vunpack.c.l.b16 %v156
    %v674 = vunpack.c.h.b16 %v156
    %v675 = vunpack.c.l.b16 %v157
    %v676 = vunpack.c.h.b16 %v157
    %v677 = vunpack.c.l.b16 %v158
    %v678 = vunpack.c.h.b16 %v158
    %v679 = vunpack.c.l.b16 %v159
    %v680 = vunpack.c.h.b16 %v159
    %v681 = vunpack.c.l.b16 %v160
    %v682 = vunpack.c.h.b16 %v160
    %v683 = vunpack.c.l.b16 %v161
    %v684 = vunpack.c.h.b16 %v161
    %v685 = vunpack.c.l.b16 %v162
    %v686 = vunpack.c.h.b16 %v162
    %v687 = vunpack.c.l.b16 %v163
    %v688 = vunpack.c.h.b16 %v163
    %v689 = vunpack.c.l.b16 %v164
    %v690 = vunpack.c.h.b16 %v164
    %v691 = vunpack.c.l.b16 %v165
    %v692 = vunpack.c.h.b16 %v165
    %v693 = vunpack.c.l.b16 %v166
    %v694 = vunpack.c.h.b16 %v166
    %v695 = vunpack.c.l.b16 %v167
    %v696 = vunpack.c.h.b16 %v167
    %v697 = vunpack.c.l.b16 %v168
    %v698 = vunpack.c.h.b16 %v168
    %v699 = vunpack.c.l.b16 %v169
    %v700 = vunpack.c.h.b16 %v169
    %v701 = vunpack.c.l.b16 %v170
    %v702 = vunpack.c.h.b16 %v170
    %v703 = vunpack.c.l.b16 %v171
    %v704 = vunpack.c.h.b16 %v171
    %v705 = vunpack.c.l.b16 %v172
    %v706 = vunpack.c.h.b16 %v172
    %v707 = vunpack.c.l.b16 %v173
    %v708 = vunpack.c.h.b16 %v173
    %v709 = vunpack.c.l.b16 %v174
    %v710 = vunpack.c.h.b16 %v174
    %v711 = vunpack.c.l.b16 %v175
    %v712 = vunpack.c.h.b16 %v175
    %v713 = vunpack.c.l.b16 %v176
    %v714 = vunpack.c.h.b16 %v176
    %v715 = vunpack.c.l.b16 %v177
    %v716 = vunpack.c.h.b16 %v177
    %v717 = vunpack.c.l.b16 %v178
    %v718 = vunpack.c.h.b16 %v178
    %v719 = vunpack.c.l.b16 %v179
    %v720 = vunpack.c.h.b16 %v179
    %v721 = vunpack.c.l.b16 %v180
    %v722 = vunpack.c.h.b16 %v180
    %v723 = vunpack.c.l.b16 %v181
    %v724 = vunpack.c.h.b16 %v181
    %v725 = vunpack.c.l.b16 %v182
    %v726 = vunpack.c.h.b16 %v182
    %v727 = vunpack.c.l.b16 %v183
    %v728 = vunpack.c.h.b16 %v183
    %v729 = vunpack.c.l.b16 %v184
    %v730 = vunpack.c.h.b16 %v184
    %v731 = vunpack.c.l.b16 %v185
    %v732 = vunpack.c.h.b16 %v185
    %v733 = vunpack.c.l.b16 %v186
    %v734 = vunpack.c.h.b16 %v186
    %v735 = vunpack.c.l.b16 %v187
    %v736 = vunpack.c.h.b16 %v187
    %v737 = vunpack.c.l.b16 %v188
    %v738 = vunpack.c.h.b16 %v188
    %v739 = vunpack.c.l.b16 %v189
    %v740 = vunpack.c.h.b16 %v189
    %v741 = vunpack.c.l.b16 %v190
    %v742 = vunpack.c.h.b16 %v190
    %v743 = vunpack.c.l.b16 %v191
    %v744 = vunpack.c.h.b16 %v191
    %v745 = vunpack.c.l.b16 %v192
    %v746 = vunpack.c.h.b16 %v192
    %v747 = vunpack.c.l.b16 %v193
    %v748 = vunpack.c.h.b16 %v193
    %v749 = vunpack.c.l.b16 %v194
    %v750 = vunpack.c.h.b16 %v194
    %v751 = vunpack.c.l.b16 %v195
    %v752 = vunpack.c.h.b16 %v195
    %v753 = vunpack.c.l.b16 %v196
    %v754 = vunpack.c.h.b16 %v196
    %v755 = vunpack.c.l.b16 %v197
    %v756 = vunpack.c.h.b16 %v197
    %v757 = vunpack.c.l.b16 %v198
    %v758 = vunpack.c.h.b16 %v198
    %v759 = vunpack.c.l.b16 %v199
    %v760 = vunpack.c.h.b16 %v199
    %v761 = vunpack.c.l.b16 %v200
    %v762 = vunpack.c.h.b16 %v200
    %v763 = vunpack.c.l.b16 %v201
    %v764 = vunpack.c.h.b16 %v201
    %v765 = vunpack.c.l.b16 %v202
    %v766 = vunpack.c.h.b16 %v202
    %v767 = vunpack.c.l.b16 %v203
    %v768 = vunpack.c.h.b16 %v203
    %v769 = vunpack.c.l.b16 %v204
    %v770 = vunpack.c.h.b16 %v204
    %v771 = vunpack.c.l.b16 %v205
    %v772 = vunpack.c.h.b16 %v205
    %v773 = vunpack.c.l.b16 %v206
    %v774 = vunpack.c.h.b16 %v206
    %v775 = vunpack.c.l.b16 %v207
    %v776 = vunpack.c.h.b16 %v207
    %v777 = vunpack.c.l.b16 %v208
    %v778 = vunpack.c.h.b16 %v208
    %v779 = vunpack.c.l.b16 %v209
    %v780 = vunpack.c.h.b16 %v209
    %v781 = vunpack.c.l.b16 %v210
    %v782 = vunpack.c.h.b16 %v210
    %v783 = vunpack.c.l.b16 %v211
    %v784 = vunpack.c.h.b16 %v211
    %v785 = vunpack.c.l.b16 %v212
    %v786 = vunpack.c.h.b16 %v212
    %v787 = vunpack.c.l.b16 %v213
    %v788 = vunpack.c.h.b16 %v213
    %v789 = vunpack.c.l.b16 %v214
    %v790 = vunpack.c.h.b16 %v214
    %v791 = vunpack.c.l.b16 %v215
    %v792 = vunpack.c.h.b16 %v215
    %v793 = vunpack.c.l.b16 %v216
    %v794 = vunpack.c.h.b16 %v216
    %v795 = vunpack.c.l.b16 %v217
    %v796 = vunpack.c.h.b16 %v217
    %v797 = vunpack.c.l.b16 %v218
    %v798 = vunpack.c.h.b16 %v218
    %v799 = vunpack.c.l.b16 %v219
    %v800 = vunpack.c.h.b16 %v219
    %v801 = vunpack.c.l.b16 %v220
    %v802 = vunpack.c.h.b16 %v220
    %v803 = vunpack.c.l.b16 %v221
    %v804 = vunpack.c.h.b16 %v221
    %v805 = vunpack.c.l.b16 %v222
    %v806 = vunpack.c.h.b16 %v222
    %v807 = vunpack.c.l.b16 %v223
    %v808 = vunpack.c.h.b16 %v223
    %v809 = vunpack.c.l.b16 %v224
    %v810 = vunpack.c.h.b16 %v224
    %v811 = vunpack.c.l.b16 %v225
    %v812 = vunpack.c.h.b16 %v225
    %v813 = vunpack.c.l.b16 %v226
    %v814 = vunpack.c.h.b16 %v226
    %v815 = vunpack.c.l.b16 %v227
    %v816 = vunpack.c.h.b16 %v227
    %v817 = vunpack.c.l.b16 %v228
    %v818 = vunpack.c.h.b16 %v228
    %v819 = vunpack.c.l.b16 %v229
    %v820 = vunpack.c.h.b16 %v229
    %v821 = vunpack.c.l.b16 %v230
    %v822 = vunpack.c.h.b16 %v230
    %v823 = vunpack.c.l.b16 %v231
    %v824 = vunpack.c.h.b16 %v231
    %v825 = vunpack.c.l.b16 %v232
    %v826 = vunpack.c.h.b16 %v232
    %v827 = vunpack.c.l.b16 %v233
    %v828 = vunpack.c.h.b16 %v233
    %v829 = vunpack.c.l.b16 %v234
    %v830 = vunpack.c.h.b16 %v234
    %v831 = vunpack.c.l.b16 %v235
    %v832 = vunpack.c.h.b16 %v235
    %v833 = vunpack.c.l.b16 %v236
    %v834 = vunpack.c.h.b16 %v236
    %v835 = vunpack.c.l.b16 %v237
    %v836 = vunpack.c.h.b16 %v237
    %v837 = vunpack.c.l.b16 %v238
    %v838 = vunpack.c.h.b16 %v238
    %v839 = vunpack.c.l.b16 %v239
    %v840 = vunpack.c.h.b16 %v239
    %v841 = vunpack.c.l.b16 %v240
    %v842 = vunpack.c.h.b16 %v240
    %v843 = vunpack.c.l.b16 %v241
    %v844 = vunpack.c.h.b16 %v241
    %v845 = vunpack.c.l.b16 %v242
    %v846 = vunpack.c.h.b16 %v242
    %v847 = vunpack.c.l.b16 %v243
    %v848 = vunpack.c.h.b16 %v243
    %v849 = vunpack.c.l.b16 %v244
    %v850 = vunpack.c.h.b16 %v244
    %v851 = vunpack.c.l.b16 %v245
    %v852 = vunpack.c.h.b16 %v245
    %v853 = vunpack.c.l.b16 %v246
    %v854 = vunpack.c.h.b16 %v246
    %v855 = vunpack.c.l.b16 %v247
    %v856 = vunpack.c.h.b16 %v247
    %v857 = vunpack.c.l.b16 %v248
    %v858 = vunpack.c.h.b16 %v248
    %v859 = vunpack.c.l.b16 %v249
    %v860 = vunpack.c.h.b16 %v249
    %v861 = vunpack.c.l.b16 %v250
    %v862 = vunpack.c.h.b16 %v250
    %v863 = vunpack.c.l.b16 %v251
    %v864 = vunpack.c.h.b16 %v251
    %v865 = vunpack.c.l.b16 %v252
    %v866 = vunpack.c.h.b16 %v252
    %v867 = vunpack.c.l.b16 %v253
    %v868 = vunpack.c.h.b16 %v253
    %v869 = vunpack.c.l.b16 %v254
    %v870 = vunpack.c.h.b16 %v254
    %v871 = vunpack.c.l.b16 %v255
    %v872 = vunpack.c.h.b16 %v255
    %v873 = vunpack.c.l.b16 %v256
    %v874 = vunpack.c.h.b16 %v256
    %v875 = vunpack.c.l.b16 %v257
    %v876 = vunpack.c.h.b16 %v257
    %v877 = vunpack.c.l.b16 %v258
    %v878 = vunpack.c.h.b16 %v258
    %v879 = vunpack.c.l.b16 %v259
    %v880 = vunpack.c.h.b16 %v259
    %v881 = vunpack.c.l.b16 %v260
    %v882 = vunpack.c.h.b16 %v260
    %v883 = vunpack.c.l.b16 %v261
    %v884 = vunpack.c.h.b16 %v261
    %v885 = vunpack.c.l.b16 %v262
    %v886 = vunpack.c.h.b16 %v262
    %v887 = vunpack.c.l.b16 %v263
    %v888 = vunpack.c.h.b16 %v263
    %v889 = vunpack.c.l.b16 %v264
    %v890 = vunpack.c.h.b16 %v264
    %v891 = vunpack.c.l.b16 %v265
    %v892 = vunpack.c.h.b16 %v265
    %v893 = vunpack.c.l.b16 %v266
    %v894 = vunpack.c.h.b16 %v266
    %v895 = vunpack.c.l.b16 %v267
    %v896 = vunpack.c.h.b16 %v267
    %v897 = vunpack.c.l.b16 %v268
    %v898 = vunpack.c.h.b16 %v268
    %v899 = vunpack.c.l.b16 %v269
    %v900 = vunpack.c.h.b16 %v269
    %v901 = vunpack.c.l.b16 %v270
    %v902 = vunpack.c.h.b16 %v270
    %v903 = vunpack.c.l.b16 %v271
    %v904 = vunpack.c.h.b16 %v271
    %v905 = vunpack.c.l.b16 %v272
    %v906 = vunpack.c.h.b16 %v272
    %v907 = vunpack.c.l.b16 %v273
    %v908 = vunpack.c.h.b16 %v273
    %v909 = vunpack.c.l.b16 %v274
    %v910 = vunpack.c.h.b16 %v274
    %v911 = vunpack.c.l.b16 %v275
    %v912 = vunpack.c.h.b16 %v275
    %v913 = vunpack.c.l.b16 %v276
    %v914 = vunpack.c.h.b16 %v276
    %v915 = vunpack.c.l.b16 %v277
    %v916 = vunpack.c.h.b16 %v277
    %v917 = vunpack.c.l.b16 %v278
    %v918 = vunpack.c.h.b16 %v278
    %v919 = vunpack.c.l.b16 %v279
    %v920 = vunpack.c.h.b16 %v279
    %v921 = vunpack.c.l.b16 %v280
    %v922 = vunpack.c.h.b16 %v280
    %v923 = vunpack.c.l.b16 %v281
    %v924 = vunpack.c.h.b16 %v281
    %v925 = vunpack.c.l.b16 %v282
    %v926 = vunpack.c.h.b16 %v282
    %v927 = vunpack.c.l.b16 %v283
    %v928 = vunpack.c.h.b16 %v283
    %v929 = vunpack.c.l.b16 %v284
    %v930 = vunpack.c.h.b16 %v284
    %v931 = vunpack.c.l.b16 %v285
    %v932 = vunpack.c.h.b16 %v285
    %v933 = vunpack.c.l.b16 %v286
    %v934 = vunpack.c.h.b16 %v286
    %v935 = vunpack.c.l.b16 %v287
    %v936 = vunpack.c.h.b16 %v287
    %v937 = vunpack.c.l.b16 %v288
    %v938 = vunpack.c.h.b16 %v288
    %v939 = vunpack.c.l.b16 %v289
    %v940 = vunpack.c.h.b16 %v289
    %v941 = vunpack.c.l.b16 %v290
    %v942 = vunpack.c.h.b16 %v290
    %v943 = vunpack.c.l.b16 %v291
    %v944 = vunpack.c.h.b16 %v291
    %v945 = vunpack.c.l.b16 %v292
    %v946 = vunpack.c.h.b16 %v292
    %v947 = vunpack.c.l.b16 %v293
    %v948 = vunpack.c.h.b16 %v293
    %v949 = vpack.c.b16 %v557, %v549
    %v950 = vpack.c.b16 %v558, %v550
    %v951 = vpack.c.b16 %v559, %v551
    %v952 = vpack.c.b16 %v560, %v552
    %v953 = vpack.c.b16 %v561, %v553
    %v954 = vpack.c.b16 %v562, %v554
    %v955 = vpack.c.b16 %v563, %v555
    %v956 = vpack.c.b16 %v564, %v556
    %v957 = vpack.c.b16 %v573, %v565
    %v958 = vpack.c.b16 %v574, %v566
    %v959 = vpack.c.b16 %v575, %v567
    %v960 = vpack.c.b16 %v576, %v568
    %v961 = vpack.c.b16 %v577, %v569
    %v962 = vpack.c.b16 %v578, %v570
    %v963 = vpack.c.b16 %v579, %v571
    %v964 = vpack.c.b16 %v580, %v572
    %v965 = vpack.c.b16 %v589, %v581
    %v966 = vpack.c.b16 %v590, %v582
    %v967 = vpack.c.b16 %v591, %v583
    %v968 = vpack.c.b16 %v592, %v584
    %v969 = vpack.c.b16 %v593, %v585
    %v970 = vpack.c.b16 %v594, %v586
    %v971 = vpack.c.b16 %v595, %v587
    %v972 = vpack.c.b16 %v596, %v588
    %v973 = vpack.c.b16 %v605, %v597
    %v974 = vpack.c.b16 %v606, %v598
    %v975 = vpack.c.b16 %v607, %v599
    %v976 = vpack.c.b16 %v608, %v600
    %v977 = vpack.c.b16 %v609, %v601
    %v978 = vpack.c.b16 %v610, %v602
    %v979 = vpack.c.b16 %v611, %v603
    %v980 = vpack.c.b16 %v612, %v604
    %v981 = vpack.c.b16 %v621, %v613
    %v982 = vpack.c.b16 %v622, %v614
    %v983 = vpack.c.b16 %v623, %v615
    %v984 = vpack.c.b16 %v624, %v616
    %v985 = vpack.c.b16 %v625, %v617
    %v986 = vpack.c.b16 %v626, %v618
    %v987 = vpack.c.b16 %v627, %v619
    %v988 = vpack.c.b16 %v628, %v620
    %v989 = vpack.c.b16 %v637, %v629
    %v990 = vpack.c.b16 %v638, %v630
    %v991 = vpack.c.b16 %v639, %v631
    %v992 = vpack.c.b16 %v640, %v632
    %v993 = vpack.c.b16 %v641, %v633
    %v994 = vpack.c.b16 %v642, %v634
    %v995 = vpack.c.b16 %v643, %v635
    %v996 = vpack.c.b16 %v644, %v636
    %v997 = vpack.c.b16 %v653, %v645
    %v998 = vpack.c.b16 %v654, %v646
    %v999 = vpack.c.b16 %v655, %v647
    %v1000 = vpack.c.b16 %v656, %v648
    %v1001 = vpack.c.b16 %v657, %v649
    %v1002 = vpack.c.b16 %v658, %v650
    %v1003 = vpack.c.b16 %v659, %v651
    %v1004 = vpack.c.b16 %v660, %v652
    %v1005 = vpack.c.b16 %v669, %v661
    %v1006 = vpack.c.b16 %v670, %v662
    %v1007 = vpack.c.b16 %v671, %v663
    %v1008 = vpack.c.b16 %v672, %v664
    %v1009 = vpack.c.b16 %v673, %v665
    %v1010 = vpack.c.b16 %v674, %v666
    %v1011 = vpack.c.b16 %v675, %v667
    %v1012 = vpack.c.b16 %v676, %v668
    %v1013 = vpack.c.b16 %v685, %v677
    %v1014 = vpack.c.b16 %v686, %v678
    %v1015 = vpack.c.b16 %v687, %v679
    %v1016 = vpack.c.b16 %v688, %v680
    %v1017 = vpack.c.b16 %v689, %v681
    %v1018 = vpack.c.b16 %v690, %v682
    %v1019 = vpack.c.b16 %v691, %v683
    %v1020 = vpack.c.b16 %v692, %v684
    %v1021 = vpack.c.b16 %v701, %v693
    %v1022 = vpack.c.b16 %v702, %v694
    %v1023 = vpack.c.b16 %v703, %v695
    %v1024 = vpack.c.b16 %v704, %v696
    %v1025 = vpack.c.b16 %v705, %v697
    %v1026 = vpack.c.b16 %v706, %v698
    %v1027 = vpack.c.b16 %v707, %v699
    %v1028 = vpack.c.b16 %v708, %v700
    %v1029 = vpack.c.b16 %v717, %v709
    %v1030 = vpack.c.b16 %v718, %v710
    %v1031 = vpack.c.b16 %v719, %v711
    %v1032 = vpack.c.b16 %v720, %v712
    %v1033 = vpack.c.b16 %v721, %v713
    %v1034 = vpack.c.b16 %v722, %v714
    %v1035 = vpack.c.b16 %v723, %v715
    %v1036 = vpack.c.b16 %v724, %v716
    %v1037 = vpack.c.b16 %v733, %v725
    %v1038 = vpack.c.b16 %v734, %v726
    %v1039 = vpack.c.b16 %v735, %v727
    %v1040 = vpack.c.b16 %v736, %v728
    %v1041 = vpack.c.b16 %v737, %v729
    %v1042 = vpack.c.b16 %v738, %v730
    %v1043 = vpack.c.b16 %v739, %v731
    %v1044 = vpack.c.b16 %v740, %v732
    %v1045 = vpack.c.b16 %v749, %v741
    %v1046 = vpack.c.b16 %v750, %v742
    %v1047 = vpack.c.b16 %v751, %v743
    %v1048 = vpack.c.b16 %v752, %v744
    %v1049 = vpack.c.b16 %v753, %v745
    %v1050 = vpack.c.b16 %v754, %v746
    %v1051 = vpack.c.b16 %v755, %v747
    %v1052 = vpack.c.b16 %v756, %v748
    %v1053 = vpack.c.b16 %v765, %v757
    %v1054 = vpack.c.b16 %v766, %v758
    %v1055 = vpack.c.b16 %v767, %v759
    %v1056 = vpack.c.b16 %v768, %v760
    %v1057 = vpack.c.b16 %v769, %v761
    %v1058 = vpack.c.b16 %v770, %v762
    %v1059 = vpack.c.b16 %v771, %v763
    %v1060 = vpack.c.b16 %v772, %v764
    %v1061 = vpack.c.b16 %v781, %v773
    %v1062 = vpack.c.b16 %v782, %v774
    %v1063 = vpack.c.b16 %v783, %v775
    %v1064 = vpack.c.b16 %v784, %v776
    %v1065 = vpack.c.b16 %v785, %v777
    %v1066 = vpack.c.b16 %v786, %v778
    %v1067 = vpack.c.b16 %v787, %v779
    %v1068 = vpack.c.b16 %v788, %v780
    %v1069 = vpack.c.b16 %v797, %v789
    %v1070 = vpack.c.b16 %v798, %v790
    %v1071 = vpack.c.b16 %v799, %v791
    %v1072 = vpack.c.b16 %v800, %v792
    %v1073 = vpack.c.b16 %v801, %v793
    %v1074 = vpack.c.b16 %v802, %v794
    %v1075 = vpack.c.b16 %v803, %v795
    %v1076 = vpack.c.b16 %v804, %v796
    %v1077 = vpack.c.b16 %v813, %v805
    %v1078 = vpack.c.b16 %v814, %v806
    %v1079 = vpack.c.b16 %v815, %v807
    %v1080 = vpack.c.b16 %v816, %v808
    %v1081 = vpack.c.b16 %v817, %v809
    %v1082 = vpack.c.b16 %v818, %v810
    %v1083 = vpack.c.b16 %v819, %v811
    %v1084 = vpack.c.b16 %v820, %v812
    %v1085 = vpack.c.b16 %v829, %v821
    %v1086 = vpack.c.b16 %v830, %v822
    %v1087 = vpack.c.b16 %v831, %v823
    %v1088 = vpack.c.b16 %v832, %v824
    %v1089 = vpack.c.b16 %v833, %v825
    %v1090 = vpack.c.b16 %v834, %v826
    %v1091 = vpack.c.b16 %v835, %v827
    %v1092 = vpack.c.b16 %v836, %v828
    %v1093 = vpack.c.b16 %v845, %v837
    %v1094 = vpack.c.b16 %v846, %v838
    %v1095 = vpack.c.b16 %v847, %v839
    %v1096 = vpack.c.b16 %v848, %v840
    %v1097 = vpack.c.b16 %v849, %v841
    %v1098 = vpack.c.b16 %v850, %v842
    %v1099 = vpack.c.b16 %v851, %v843
    %v1100 = vpack.c.b16 %v852, %v844
    %v1101 = vpack.c.b16 %v861, %v853
    %v1102 = vpack.c.b16 %v862, %v854
    %v1103 = vpack.c.b16 %v863, %v855
    %v1104 = vpack.c.b16 %v864, %v856
    %v1105 = vpack.c.b16 %v865, %v857
    %v1106 = vpack.c.b16 %v866, %v858
    %v1107 = vpack.c.b16 %v867, %v859
    %v1108 = vpack.c.b16 %v868, %v860
    %v1109 = vpack.c.b16 %v877, %v869
    %v1110 = vpack.c.b16 %v878, %v870
    %v1111 = vpack.c.b16 %v879, %v871
    %v1112 = vpack.c.b16 %v880, %v872
    %v1113 = vpack.c.b16 %v881, %v873
    %v1114 = vpack.c.b16 %v882, %v874
    %v1115 = vpack.c.b16 %v883, %v875
    %v1116 = vpack.c.b16 %v884, %v876
    %v1117 = vpack.c.b16 %v893, %v885
    %v1118 = vpack.c.b16 %v894, %v886
    %v1119 = vpack.c.b16 %v895, %v887
    %v1120 = vpack.c.b16 %v896, %v888
    %v1121 = vpack.c.b16 %v897, %v889
    %v1122 = vpack.c.b16 %v898, %v890
    %v1123 = vpack.c.b16 %v899, %v891
    %v1124 = vpack.c.b16 %v900, %v892
    %v1125 = vpack.c.b16 %v909, %v901
    %v1126 = vpack.c.b16 %v910, %v902
    %v1127 = vpack.c.b16 %v911, %v903
    %v1128 = vpack.c.b16 %v912, %v904
    %v1129 = vpack.c.b16 %v913, %v905
    %v1130 = vpack.c.b16 %v914, %v906
    %v1131 = vpack.c.b16 %v915, %v907
    %v1132 = vpack.c.b16 %v916, %v908
    %v1133 = vpack.c.b16 %v925, %v917
    %v1134 = vpack.c.b16 %v926, %v918
    %v1135 = vpack.c.b16 %v927, %v919
    %v1136 = vpack.c.b16 %v928, %v920
    %v1137 = vpack.c.b16 %v929, %v921
    %v1138 = vpack.c.b16 %v930, %v922
    %v1139 = vpack.c.b16 %v931, %v923
    %v1140 = vpack.c.b16 %v932, %v924
    %v1141 = vpack.c.b16 %v941, %v933
    %v1142 = vpack.c.b16 %v942, %v934
    %v1143 = vpack.c.b16 %v943, %v935
    %v1144 = vpack.c.b16 %v944, %v936
    %v1145 = vpack.c.b16 %v945, %v937
    %v1146 = vpack.c.b16 %v946, %v938
    %v1147 = vpack.c.b16 %v947, %v939
    %v1148 = vpack.c.b16 %v948, %v940
    %vm1349 = vcmask 130048
    %v1351 = vsel %vm1349, %v345, 0
    %1353 = vmatprep.subr.bf16.mxu0 %v1006
    %1354 = vmatpush1.bf16.msra.mxu0 %v1005
    %1355 = vmatprep.subr.bf16.mxu0 %v998
    %1356 = vmatpush1.bf16.msra.mxu0 %v997
    %1357 = vmatprep.subr.bf16.mxu0 %v990
    %1358 = vmatpush1.bf16.msra.mxu0 %v989
    %1359 = vmatprep.subr.bf16.mxu0 %v982
    %1360 = vmatpush1.bf16.msra.mxu0 %v981
    %1361 = vmatprep.subr.bf16.mxu0 %v974
    %1362 = vmatpush1.bf16.msra.mxu0 %v973
    %1363 = vmatprep.subr.bf16.mxu0 %v966
    %1364 = vmatpush1.bf16.msra.mxu0 %v965
    %1365 = vmatprep.subr.bf16.mxu0 %v958
    %1366 = vmatpush1.bf16.msra.mxu0 %v957
    %1367 = vmatprep.subr.bf16.mxu0 %v950
    %1368 = vmatpush1.bf16.msra.mxu0 %v949
    %1369 = vmatprep.subr.bf16.mxu0 %v1070
    %1370 = vmatpush2.bf16.msra.mxu0 %v1069
    %1371 = vmatprep.subr.bf16.mxu0 %v1062
    %1372 = vmatpush2.bf16.msra.mxu0 %v1061
    %1373 = vmatprep.subr.bf16.mxu0 %v1054
    %1374 = vmatpush2.bf16.msra.mxu0 %v1053
    %1375 = vmatprep.subr.bf16.mxu0 %v1046
    %1376 = vmatpush2.bf16.msra.mxu0 %v1045
    %1377 = vmatprep.subr.bf16.mxu0 %v1038
    %1378 = vmatpush2.bf16.msra.mxu0 %v1037
    %1379 = vmatprep.subr.bf16.mxu0 %v1030
    %1380 = vmatpush2.bf16.msra.mxu0 %v1029
    %1381 = vmatprep.subr.bf16.mxu0 %v1022
    %1382 = vmatpush2.bf16.msra.mxu0 %v1021
    %1383 = vmatprep.subr.bf16.mxu0 %v1014
    %1384 = vmatpush2.bf16.msra.mxu0 %v1013
    %1385 = vmatprep.mubr.bf16.mxu0 %v343
    %1386 = vmatmul.mubr.bf16.gmra.mxu0 %v342
    %v1387 = vpop.f32.mrf.mxu0
    %v1388 = vadd.f32 %v299, %v1387
    %v1389 = vpop.f32.mrf.mxu0
    %v1390 = vadd.f32 %v303, %v1389
    %v1391 = vpop.f32.mrf.mxu0
    %v1392 = vpop.f32.mrf.mxu0
    %1393 = vdwg.mxu0
    %1394 = vmatprep.subr.bf16.mxu0 %v1134
    %1395 = vmatpush1.bf16.msra.mxu0 %v1133
    %1396 = vmatprep.subr.bf16.mxu0 %v1126
    %1397 = vmatpush1.bf16.msra.mxu0 %v1125
    %1398 = vmatprep.subr.bf16.mxu0 %v1118
    %1399 = vmatpush1.bf16.msra.mxu0 %v1117
    %1400 = vmatprep.subr.bf16.mxu0 %v1110
    %1401 = vmatpush1.bf16.msra.mxu0 %v1109
    %1402 = vmatprep.subr.bf16.mxu0 %v1102
    %1403 = vmatpush1.bf16.msra.mxu0 %v1101
    %1404 = vmatprep.subr.bf16.mxu0 %v1094
    %1405 = vmatpush1.bf16.msra.mxu0 %v1093
    %1406 = vmatprep.subr.bf16.mxu0 %v1086
    %1407 = vmatpush1.bf16.msra.mxu0 %v1085
    %1408 = vmatprep.subr.bf16.mxu0 %v1078
    %1409 = vmatpush1.bf16.msra.mxu0 %v1077
    %1410 = vmatprep.subr.bf16.mxu0 0
    %1411 = vmatpush2.bf16.msra.mxu0 0
    %1412 = vmatprep.subr.bf16.mxu0 0
    %1413 = vmatpush2.bf16.msra.mxu0 0
    %1414 = vmatprep.subr.bf16.mxu0 0
    %1415 = vmatpush2.bf16.msra.mxu0 0
    %1416 = vmatprep.subr.bf16.mxu0 0
    %1417 = vmatpush2.bf16.msra.mxu0 0
    %1418 = vmatprep.subr.bf16.mxu0 0
    %1419 = vmatpush2.bf16.msra.mxu0 0
    %1420 = vmatprep.subr.bf16.mxu0 0
    %1421 = vmatpush2.bf16.msra.mxu0 0
    %1422 = vmatprep.subr.bf16.mxu0 0
    %1423 = vmatpush2.bf16.msra.mxu0 0
    %1424 = vmatprep.subr.bf16.mxu0 %v1142
    %1425 = vmatpush2.bf16.msra.mxu0 %v1141
    %1426 = vmatprep.mubr.bf16.mxu0 %v1351
    %1427 = vmatmul.mubr.bf16.gmra.mxu0 %v344
    %v1428 = vpop.f32.mrf.mxu0
    %v1429 = vadd.f32 %v1388, %v1428
    %v1430 = vpop.f32.mrf.mxu0
    %v1431 = vadd.f32 %v1390, %v1430
    %v1432 = vpop.f32.mrf.mxu0
    %v1433 = vpop.f32.mrf.mxu0
    %1434 = vdwg.mxu0
    %1435 = vmatprep.subr.bf16.mxu0 %v1008
    %1436 = vmatpush1.bf16.msra.mxu0 %v1007
    %1437 = vmatprep.subr.bf16.mxu0 %v1000
    %1438 = vmatpush1.bf16.msra.mxu0 %v999
    %1439 = vmatprep.subr.bf16.mxu0 %v992
    %1440 = vmatpush1.bf16.msra.mxu0 %v991
    %1441 = vmatprep.subr.bf16.mxu0 %v984
    %1442 = vmatpush1.bf16.msra.mxu0 %v983
    %1443 = vmatprep.subr.bf16.mxu0 %v976
    %1444 = vmatpush1.bf16.msra.mxu0 %v975
    %1445 = vmatprep.subr.bf16.mxu0 %v968
    %1446 = vmatpush1.bf16.msra.mxu0 %v967
    %1447 = vmatprep.subr.bf16.mxu0 %v960
    %1448 = vmatpush1.bf16.msra.mxu0 %v959
    %1449 = vmatprep.subr.bf16.mxu0 %v952
    %1450 = vmatpush1.bf16.msra.mxu0 %v951
    %1451 = vmatprep.subr.bf16.mxu0 %v1072
    %1452 = vmatpush2.bf16.msra.mxu0 %v1071
    %1453 = vmatprep.subr.bf16.mxu0 %v1064
    %1454 = vmatpush2.bf16.msra.mxu0 %v1063
    %1455 = vmatprep.subr.bf16.mxu0 %v1056
    %1456 = vmatpush2.bf16.msra.mxu0 %v1055
    %1457 = vmatprep.subr.bf16.mxu0 %v1048
    %1458 = vmatpush2.bf16.msra.mxu0 %v1047
    %1459 = vmatprep.subr.bf16.mxu0 %v1040
    %1460 = vmatpush2.bf16.msra.mxu0 %v1039
    %1461 = vmatprep.subr.bf16.mxu0 %v1032
    %1462 = vmatpush2.bf16.msra.mxu0 %v1031
    %1463 = vmatprep.subr.bf16.mxu0 %v1024
    %1464 = vmatpush2.bf16.msra.mxu0 %v1023
    %1465 = vmatprep.subr.bf16.mxu0 %v1016
    %1466 = vmatpush2.bf16.msra.mxu0 %v1015
    %1467 = vmatprep.mubr.bf16.mxu0 %v343
    %1468 = vmatmul.mubr.bf16.gmra.mxu0 %v342
    %v1469 = vpop.f32.mrf.mxu0
    %v1470 = vadd.f32 %v307, %v1469
    %v1471 = vpop.f32.mrf.mxu0
    %v1472 = vadd.f32 %v311, %v1471
    %v1473 = vpop.f32.mrf.mxu0
    %v1474 = vpop.f32.mrf.mxu0
    %1475 = vdwg.mxu0
    %1476 = vmatprep.subr.bf16.mxu0 %v1136
    %1477 = vmatpush1.bf16.msra.mxu0 %v1135
    %1478 = vmatprep.subr.bf16.mxu0 %v1128
    %1479 = vmatpush1.bf16.msra.mxu0 %v1127
    %1480 = vmatprep.subr.bf16.mxu0 %v1120
    %1481 = vmatpush1.bf16.msra.mxu0 %v1119
    %1482 = vmatprep.subr.bf16.mxu0 %v1112
    %1483 = vmatpush1.bf16.msra.mxu0 %v1111
    %1484 = vmatprep.subr.bf16.mxu0 %v1104
    %1485 = vmatpush1.bf16.msra.mxu0 %v1103
    %1486 = vmatprep.subr.bf16.mxu0 %v1096
    %1487 = vmatpush1.bf16.msra.mxu0 %v1095
    %1488 = vmatprep.subr.bf16.mxu0 %v1088
    %1489 = vmatpush1.bf16.msra.mxu0 %v1087
    %1490 = vmatprep.subr.bf16.mxu0 %v1080
    %1491 = vmatpush1.bf16.msra.mxu0 %v1079
    %1492 = vmatprep.subr.bf16.mxu0 0
    %1493 = vmatpush2.bf16.msra.mxu0 0
    %1494 = vmatprep.subr.bf16.mxu0 0
    %1495 = vmatpush2.bf16.msra.mxu0 0
    %1496 = vmatprep.subr.bf16.mxu0 0
    %1497 = vmatpush2.bf16.msra.mxu0 0
    %1498 = vmatprep.subr.bf16.mxu0 0
    %1499 = vmatpush2.bf16.msra.mxu0 0
    %1500 = vmatprep.subr.bf16.mxu0 0
    %1501 = vmatpush2.bf16.msra.mxu0 0
    %1502 = vmatprep.subr.bf16.mxu0 0
    %1503 = vmatpush2.bf16.msra.mxu0 0
    %1504 = vmatprep.subr.bf16.mxu0 0
    %1505 = vmatpush2.bf16.msra.mxu0 0
    %1506 = vmatprep.subr.bf16.mxu0 %v1144
    %1507 = vmatpush2.bf16.msra.mxu0 %v1143
    %1508 = vmatprep.mubr.bf16.mxu0 %v1351
    %1509 = vmatmul.mubr.bf16.gmra.mxu0 %v344
    %v1510 = vpop.f32.mrf.mxu0
    %v1511 = vadd.f32 %v1470, %v1510
    %v1512 = vpop.f32.mrf.mxu0
    %v1513 = vadd.f32 %v1472, %v1512
    %v1514 = vpop.f32.mrf.mxu0
    %v1515 = vpop.f32.mrf.mxu0
    %1516 = vdwg.mxu0
    %1517 = vmatprep.subr.bf16.mxu0 %v1010
    %1518 = vmatpush1.bf16.msra.mxu0 %v1009
    %1519 = vmatprep.subr.bf16.mxu0 %v1002
    %1520 = vmatpush1.bf16.msra.mxu0 %v1001
    %1521 = vmatprep.subr.bf16.mxu0 %v994
    %1522 = vmatpush1.bf16.msra.mxu0 %v993
    %1523 = vmatprep.subr.bf16.mxu0 %v986
    %1524 = vmatpush1.bf16.msra.mxu0 %v985
    %1525 = vmatprep.subr.bf16.mxu0 %v978
    %1526 = vmatpush1.bf16.msra.mxu0 %v977
    %1527 = vmatprep.subr.bf16.mxu0 %v970
    %1528 = vmatpush1.bf16.msra.mxu0 %v969
    %1529 = vmatprep.subr.bf16.mxu0 %v962
    %1530 = vmatpush1.bf16.msra.mxu0 %v961
    %1531 = vmatprep.subr.bf16.mxu0 %v954
    %1532 = vmatpush1.bf16.msra.mxu0 %v953
    %1533 = vmatprep.subr.bf16.mxu0 %v1074
    %1534 = vmatpush2.bf16.msra.mxu0 %v1073
    %1535 = vmatprep.subr.bf16.mxu0 %v1066
    %1536 = vmatpush2.bf16.msra.mxu0 %v1065
    %1537 = vmatprep.subr.bf16.mxu0 %v1058
    %1538 = vmatpush2.bf16.msra.mxu0 %v1057
    %1539 = vmatprep.subr.bf16.mxu0 %v1050
    %1540 = vmatpush2.bf16.msra.mxu0 %v1049
    %1541 = vmatprep.subr.bf16.mxu0 %v1042
    %1542 = vmatpush2.bf16.msra.mxu0 %v1041
    %1543 = vmatprep.subr.bf16.mxu0 %v1034
    %1544 = vmatpush2.bf16.msra.mxu0 %v1033
    %1545 = vmatprep.subr.bf16.mxu0 %v1026
    %1546 = vmatpush2.bf16.msra.mxu0 %v1025
    %1547 = vmatprep.subr.bf16.mxu0 %v1018
    %1548 = vmatpush2.bf16.msra.mxu0 %v1017
    %1549 = vmatprep.mubr.bf16.mxu0 %v343
    %1550 = vmatmul.mubr.bf16.gmra.mxu0 %v342
    %v1551 = vpop.f32.mrf.mxu0
    %v1552 = vadd.f32 %v315, %v1551
    %v1553 = vpop.f32.mrf.mxu0
    %v1554 = vadd.f32 %v319, %v1553
    %v1555 = vpop.f32.mrf.mxu0
    %v1556 = vpop.f32.mrf.mxu0
    %1557 = vdwg.mxu0
    %1558 = vmatprep.subr.bf16.mxu0 %v1138
    %1559 = vmatpush1.bf16.msra.mxu0 %v1137
    %1560 = vmatprep.subr.bf16.mxu0 %v1130
    %1561 = vmatpush1.bf16.msra.mxu0 %v1129
    %1562 = vmatprep.subr.bf16.mxu0 %v1122
    %1563 = vmatpush1.bf16.msra.mxu0 %v1121
    %1564 = vmatprep.subr.bf16.mxu0 %v1114
    %1565 = vmatpush1.bf16.msra.mxu0 %v1113
    %1566 = vmatprep.subr.bf16.mxu0 %v1106
    %1567 = vmatpush1.bf16.msra.mxu0 %v1105
    %1568 = vmatprep.subr.bf16.mxu0 %v1098
    %1569 = vmatpush1.bf16.msra.mxu0 %v1097
    %1570 = vmatprep.subr.bf16.mxu0 %v1090
    %1571 = vmatpush1.bf16.msra.mxu0 %v1089
    %1572 = vmatprep.subr.bf16.mxu0 %v1082
    %1573 = vmatpush1.bf16.msra.mxu0 %v1081
    %1574 = vmatprep.subr.bf16.mxu0 0
    %1575 = vmatpush2.bf16.msra.mxu0 0
    %1576 = vmatprep.subr.bf16.mxu0 0
    %1577 = vmatpush2.bf16.msra.mxu0 0
    %1578 = vmatprep.subr.bf16.mxu0 0
    %1579 = vmatpush2.bf16.msra.mxu0 0
    %1580 = vmatprep.subr.bf16.mxu0 0
    %1581 = vmatpush2.bf16.msra.mxu0 0
    %1582 = vmatprep.subr.bf16.mxu0 0
    %1583 = vmatpush2.bf16.msra.mxu0 0
    %1584 = vmatprep.subr.bf16.mxu0 0
    %1585 = vmatpush2.bf16.msra.mxu0 0
    %1586 = vmatprep.subr.bf16.mxu0 0
    %1587 = vmatpush2.bf16.msra.mxu0 0
    %1588 = vmatprep.subr.bf16.mxu0 %v1146
    %1589 = vmatpush2.bf16.msra.mxu0 %v1145
    %1590 = vmatprep.mubr.bf16.mxu0 %v1351
    %1591 = vmatmul.mubr.bf16.gmra.mxu0 %v344
    %v1592 = vpop.f32.mrf.mxu0
    %v1593 = vadd.f32 %v1552, %v1592
    %v1594 = vpop.f32.mrf.mxu0
    %v1595 = vadd.f32 %v1554, %v1594
    %v1596 = vpop.f32.mrf.mxu0
    %v1597 = vpop.f32.mrf.mxu0
    %1598 = vdwg.mxu0
    %1599 = vmatprep.subr.bf16.mxu0 %v1012
    %1600 = vmatpush1.bf16.msra.mxu0 %v1011
    %1601 = vmatprep.subr.bf16.mxu0 %v1004
    %1602 = vmatpush1.bf16.msra.mxu0 %v1003
    %1603 = vmatprep.subr.bf16.mxu0 %v996
    %1604 = vmatpush1.bf16.msra.mxu0 %v995
    %1605 = vmatprep.subr.bf16.mxu0 %v988
    %1606 = vmatpush1.bf16.msra.mxu0 %v987
    %1607 = vmatprep.subr.bf16.mxu0 %v980
    %1608 = vmatpush1.bf16.msra.mxu0 %v979
    %1609 = vmatprep.subr.bf16.mxu0 %v972
    %1610 = vmatpush1.bf16.msra.mxu0 %v971
    %1611 = vmatprep.subr.bf16.mxu0 %v964
    %1612 = vmatpush1.bf16.msra.mxu0 %v963
    %1613 = vmatprep.subr.bf16.mxu0 %v956
    %1614 = vmatpush1.bf16.msra.mxu0 %v955
    %1615 = vmatprep.subr.bf16.mxu0 %v1076
    %1616 = vmatpush2.bf16.msra.mxu0 %v1075
    %1617 = vmatprep.subr.bf16.mxu0 %v1068
    %1618 = vmatpush2.bf16.msra.mxu0 %v1067
    %1619 = vmatprep.subr.bf16.mxu0 %v1060
    %1620 = vmatpush2.bf16.msra.mxu0 %v1059
    %1621 = vmatprep.subr.bf16.mxu0 %v1052
    %1622 = vmatpush2.bf16.msra.mxu0 %v1051
    %1623 = vmatprep.subr.bf16.mxu0 %v1044
    %1624 = vmatpush2.bf16.msra.mxu0 %v1043
    %1625 = vmatprep.subr.bf16.mxu0 %v1036
    %1626 = vmatpush2.bf16.msra.mxu0 %v1035
    %1627 = vmatprep.subr.bf16.mxu0 %v1028
    %1628 = vmatpush2.bf16.msra.mxu0 %v1027
    %1629 = vmatprep.subr.bf16.mxu0 %v1020
    %1630 = vmatpush2.bf16.msra.mxu0 %v1019
    %1631 = vmatprep.mubr.bf16.mxu0 %v343
    %1632 = vmatmul.mubr.bf16.gmra.mxu0 %v342
    %v1633 = vpop.f32.mrf.mxu0
    %v1634 = vadd.f32 %v323, %v1633
    %v1635 = vpop.f32.mrf.mxu0
    %v1636 = vadd.f32 %v327, %v1635
    %v1637 = vpop.f32.mrf.mxu0
    %v1638 = vpop.f32.mrf.mxu0
    %1639 = vdwg.mxu0
    %1640 = vmatprep.subr.bf16.mxu0 %v1140
    %1641 = vmatpush1.bf16.msra.mxu0 %v1139
    %1642 = vmatprep.subr.bf16.mxu0 %v1132
    %1643 = vmatpush1.bf16.msra.mxu0 %v1131
    %1644 = vmatprep.subr.bf16.mxu0 %v1124
    %1645 = vmatpush1.bf16.msra.mxu0 %v1123
    %1646 = vmatprep.subr.bf16.mxu0 %v1116
    %1647 = vmatpush1.bf16.msra.mxu0 %v1115
    %1648 = vmatprep.subr.bf16.mxu0 %v1108
    %1649 = vmatpush1.bf16.msra.mxu0 %v1107
    %1650 = vmatprep.subr.bf16.mxu0 %v1100
    %1651 = vmatpush1.bf16.msra.mxu0 %v1099
    %1652 = vmatprep.subr.bf16.mxu0 %v1092
    %1653 = vmatpush1.bf16.msra.mxu0 %v1091
    %1654 = vmatprep.subr.bf16.mxu0 %v1084
    %1655 = vmatpush1.bf16.msra.mxu0 %v1083
    %1656 = vmatprep.subr.bf16.mxu0 0
    %1657 = vmatpush2.bf16.msra.mxu0 0
    %1658 = vmatprep.subr.bf16.mxu0 0
    %1659 = vmatpush2.bf16.msra.mxu0 0
    %1660 = vmatprep.subr.bf16.mxu0 0
    %1661 = vmatpush2.bf16.msra.mxu0 0
    %1662 = vmatprep.subr.bf16.mxu0 0
    %1663 = vmatpush2.bf16.msra.mxu0 0
    %1664 = vmatprep.subr.bf16.mxu0 0
    %1665 = vmatpush2.bf16.msra.mxu0 0
    %1666 = vmatprep.subr.bf16.mxu0 0
    %1667 = vmatpush2.bf16.msra.mxu0 0
    %1668 = vmatprep.subr.bf16.mxu0 0
    %1669 = vmatpush2.bf16.msra.mxu0 0
    %1670 = vmatprep.subr.bf16.mxu0 %v1148
    %1671 = vmatpush2.bf16.msra.mxu0 %v1147
    %1672 = vmatprep.mubr.bf16.mxu0 %v1351
    %1673 = vmatmul.mubr.bf16.gmra.mxu0 %v344
    %v1674 = vpop.f32.mrf.mxu0
    %v1675 = vadd.f32 %v1634, %v1674
    %v1676 = vpop.f32.mrf.mxu0
    %v1677 = vadd.f32 %v1636, %v1676
    %v1678 = vpop.f32.mrf.mxu0
    %v1679 = vpop.f32.mrf.mxu0
    %1680 = vdwg.mxu0
    %v1681 = vmax.f32 %v1429, 0.0
    %v1682 = vmax.f32 %v1431, 0.0
    %v1683 = vmax.f32 %v1511, 0.0
    %v1684 = vmax.f32 %v1513, 0.0
    %v1685 = vmax.f32 %v1593, 0.0
    %v1686 = vmax.f32 %v1595, 0.0
    %v1687 = vmax.f32 %v1675, 0.0
    %v1688 = vmax.f32 %v1677, 0.0
    %v1689 = vpack.c.bf16 %v1681, %v1681
    %v1690 = vpack.c.bf16 %v1682, %v1682
    %v1691 = vpack.c.bf16 %v1683, %v1683
    %v1692 = vpack.c.bf16 %v1684, %v1684
    %v1693 = vpack.c.bf16 %v1685, %v1685
    %v1694 = vpack.c.bf16 %v1686, %v1686
    %v1695 = vpack.c.bf16 %v1687, %v1687
    %v1696 = vpack.c.bf16 %v1688, %v1688
    %v1697 = vld [vmem:[#allocation8] sm:$0xf]
    %v1698 = vld [vmem:[#allocation8 + $0x4] sm:$0xf]
    %v1699 = vld [vmem:[#allocation8 + $0x8] sm:$0xf]
    %v1700 = vld [vmem:[#allocation8 + $0xc] sm:$0xf]
    %v1701 = vld [vmem:[#allocation8 + $0x10] sm:$0xf]
    %v1702 = vld [vmem:[#allocation8 + $0x14] sm:$0xf]
    %v1703 = vld [vmem:[#allocation8 + $0x18] sm:$0xf]
    %v1704 = vld [vmem:[#allocation8 + $0x1c] sm:$0xf]
    %v1705 = vld [vmem:[#allocation8 + $0x20] sm:$0xf]
    %v1706 = vld [vmem:[#allocation8 + $0x24] sm:$0xf]
    %v1707 = vld [vmem:[#allocation8 + $0x28] sm:$0xf]
    %v1708 = vld [vmem:[#allocation8 + $0x2c] sm:$0xf]
    %v1709 = vld [vmem:[#allocation8 + $0x30] sm:$0xf]
    %v1710 = vld [vmem:[#allocation8 + $0x34] sm:$0xf]
    %v1711 = vld [vmem:[#allocation8 + $0x38] sm:$0xf]
    %v1712 = vld [vmem:[#allocation8 + $0x3c] sm:$0xf]
    %v1713 = vld [vmem:[#allocation8 + $0x40] sm:$0xf]
    %v1714 = vld [vmem:[#allocation8 + $0x44] sm:$0xf]
    %v1715 = vld [vmem:[#allocation8 + $0x48] sm:$0xf]
    %v1716 = vld [vmem:[#allocation8 + $0x4c] sm:$0xf]
    %v1717 = vld [vmem:[#allocation8 + $0x50] sm:$0xf]
    %v1718 = vld [vmem:[#allocation8 + $0x54] sm:$0xf]
    %v1719 = vld [vmem:[#allocation8 + $0x58] sm:$0xf]
    %v1720 = vld [vmem:[#allocation8 + $0x5c] sm:$0xf]
    %v1721 = vld [vmem:[#allocation8 + $0x60] sm:$0xf]
    %v1722 = vld [vmem:[#allocation8 + $0x64] sm:$0xf]
    %v1723 = vld [vmem:[#allocation8 + $0x68] sm:$0xf]
    %v1724 = vld [vmem:[#allocation8 + $0x6c] sm:$0xf]
    %v1725 = vld [vmem:[#allocation8 + $0x70] sm:$0xf]
    %v1726 = vld [vmem:[#allocation8 + $0x74] sm:$0xf]
    %v1727 = vld [vmem:[#allocation8 + $0x78] sm:$0xf]
    %v1728 = vld [vmem:[#allocation8 + $0x7c] sm:$0xf]
    %v1729 = vld [vmem:[#allocation8 + $0x80] sm:$0xf]
    %v1730 = vld [vmem:[#allocation8 + $0x84] sm:$0xf]
    %v1731 = vld [vmem:[#allocation8 + $0x88] sm:$0xf]
    %v1732 = vld [vmem:[#allocation8 + $0x8c] sm:$0xf]
    %v1733 = vld [vmem:[#allocation8 + $0x90] sm:$0xf]
    %v1734 = vld [vmem:[#allocation8 + $0x94] sm:$0xf]
    %v1735 = vld [vmem:[#allocation8 + $0x98] sm:$0xf]
    %v1736 = vld [vmem:[#allocation8 + $0x9c] sm:$0xf]
    %v1737 = vld [vmem:[#allocation8 + $0xa0] sm:$0xf]
    %v1738 = vld [vmem:[#allocation8 + $0xa4] sm:$0xf]
    %v1739 = vld [vmem:[#allocation8 + $0xa8] sm:$0xf]
    %v1740 = vld [vmem:[#allocation8 + $0xac] sm:$0xf]
    %v1741 = vld [vmem:[#allocation8 + $0xb0] sm:$0xf]
    %v1742 = vld [vmem:[#allocation8 + $0xb4] sm:$0xf]
    %v1743 = vld [vmem:[#allocation8 + $0xb8] sm:$0xf]
    %v1744 = vld [vmem:[#allocation8 + $0xbc] sm:$0xf]
    %v1745 = vld [vmem:[#allocation8 + $0xc0] sm:$0xf]
    %v1746 = vld [vmem:[#allocation8 + $0xc4] sm:$0xf]
    %v1747 = vld [vmem:[#allocation8 + $0xc8] sm:$0xf]
    %v1748 = vld [vmem:[#allocation8 + $0xcc] sm:$0xf]
    %v1749 = vld [vmem:[#allocation8 + $0xd0] sm:$0xf]
    %v1750 = vld [vmem:[#allocation8 + $0xd4] sm:$0xf]
    %v1751 = vld [vmem:[#allocation8 + $0xd8] sm:$0xf]
    %v1752 = vld [vmem:[#allocation8 + $0xdc] sm:$0xf]
    %v1753 = vld [vmem:[#allocation8 + $0xe0] sm:$0xf]
    %v1754 = vld [vmem:[#allocation8 + $0xe4] sm:$0xf]
    %v1755 = vld [vmem:[#allocation8 + $0xe8] sm:$0xf]
    %v1756 = vld [vmem:[#allocation8 + $0xec] sm:$0xf]
    %v1757 = vld [vmem:[#allocation8 + $0xf0] sm:$0xf]
    %v1758 = vld [vmem:[#allocation8 + $0xf4] sm:$0xf]
    %v1759 = vld [vmem:[#allocation8 + $0xf8] sm:$0xf]
    %v1760 = vld [vmem:[#allocation8 + $0xfc] sm:$0xf]
    %v1761 = vld [vmem:[#allocation8 + $0x100] sm:$0xf]
    %v1762 = vld [vmem:[#allocation8 + $0x104] sm:$0xf]
    %v1763 = vld [vmem:[#allocation8 + $0x108] sm:$0xf]
    %v1764 = vld [vmem:[#allocation8 + $0x10c] sm:$0xf]
    %v1765 = vld [vmem:[#allocation8 + $0x110] sm:$0xf]
    %v1766 = vld [vmem:[#allocation8 + $0x114] sm:$0xf]
    %v1767 = vld [vmem:[#allocation8 + $0x118] sm:$0xf]
    %v1768 = vld [vmem:[#allocation8 + $0x11c] sm:$0xf]
    %v1769 = vld [vmem:[#allocation8 + $0x120] sm:$0xf]
    %v1770 = vld [vmem:[#allocation8 + $0x124] sm:$0xf]
    %v1771 = vld [vmem:[#allocation8 + $0x128] sm:$0xf]
    %v1772 = vld [vmem:[#allocation8 + $0x12c] sm:$0xf]
    %v1773 = vld [vmem:[#allocation8 + $0x130] sm:$0xf]
    %v1774 = vld [vmem:[#allocation8 + $0x134] sm:$0xf]
    %v1775 = vld [vmem:[#allocation8 + $0x138] sm:$0xf]
    %v1776 = vld [vmem:[#allocation8 + $0x13c] sm:$0xf]
    %v1777 = vld [vmem:[#allocation8 + $0x140] sm:$0xf]
    %v1778 = vld [vmem:[#allocation8 + $0x144] sm:$0xf]
    %v1779 = vld [vmem:[#allocation8 + $0x148] sm:$0xf]
    %v1780 = vld [vmem:[#allocation8 + $0x14c] sm:$0xf]
    %v1781 = vld [vmem:[#allocation8 + $0x150] sm:$0xf]
    %v1782 = vld [vmem:[#allocation8 + $0x154] sm:$0xf]
    %v1783 = vld [vmem:[#allocation8 + $0x158] sm:$0xf]
    %v1784 = vld [vmem:[#allocation8 + $0x15c] sm:$0xf]
    %v1785 = vld [vmem:[#allocation8 + $0x160] sm:$0xf]
    %v1786 = vld [vmem:[#allocation8 + $0x164] sm:$0xf]
    %v1787 = vld [vmem:[#allocation8 + $0x168] sm:$0xf]
    %v1788 = vld [vmem:[#allocation8 + $0x16c] sm:$0xf]
    %v1789 = vld [vmem:[#allocation8 + $0x170] sm:$0xf]
    %v1790 = vld [vmem:[#allocation8 + $0x174] sm:$0xf]
    %v1791 = vld [vmem:[#allocation8 + $0x178] sm:$0xf]
    %v1792 = vld [vmem:[#allocation8 + $0x17c] sm:$0xf]
    %v1793 = vld [vmem:[#allocation8 + $0x180] sm:$0xf]
    %v1794 = vld [vmem:[#allocation8 + $0x184] sm:$0xf]
    %v1795 = vld [vmem:[#allocation8 + $0x188] sm:$0xf]
    %v1796 = vld [vmem:[#allocation8 + $0x18c] sm:$0xf]
    %v1797 = vld [vmem:[#allocation8 + $0x190] sm:$0xf]
    %v1798 = vld [vmem:[#allocation8 + $0x194] sm:$0xf]
    %v1799 = vld [vmem:[#allocation8 + $0x198] sm:$0xf]
    %v1800 = vld [vmem:[#allocation8 + $0x19c] sm:$0xf]
    %v1801 = vld [vmem:[#allocation8 + $0x1a0] sm:$0xf]
    %v1802 = vld [vmem:[#allocation8 + $0x1a4] sm:$0xf]
    %v1803 = vld [vmem:[#allocation8 + $0x1a8] sm:$0xf]
    %v1804 = vld [vmem:[#allocation8 + $0x1ac] sm:$0xf]
    %v1805 = vld [vmem:[#allocation8 + $0x1b0] sm:$0xf]
    %v1806 = vld [vmem:[#allocation8 + $0x1b4] sm:$0xf]
    %v1807 = vld [vmem:[#allocation8 + $0x1b8] sm:$0xf]
    %v1808 = vld [vmem:[#allocation8 + $0x1bc] sm:$0xf]
    %v1809 = vld [vmem:[#allocation8 + $0x1c0] sm:$0xf]
    %v1810 = vld [vmem:[#allocation8 + $0x1c4] sm:$0xf]
    %v1811 = vld [vmem:[#allocation8 + $0x1c8] sm:$0xf]
    %v1812 = vld [vmem:[#allocation8 + $0x1cc] sm:$0xf]
    %v1813 = vld [vmem:[#allocation8 + $0x1d0] sm:$0xf]
    %v1814 = vld [vmem:[#allocation8 + $0x1d4] sm:$0xf]
    %v1815 = vld [vmem:[#allocation8 + $0x1d8] sm:$0xf]
    %v1816 = vld [vmem:[#allocation8 + $0x1dc] sm:$0xf]
    %v1817 = vld [vmem:[#allocation8 + $0x1e0] sm:$0xf]
    %v1818 = vld [vmem:[#allocation8 + $0x1e4] sm:$0xf]
    %v1819 = vld [vmem:[#allocation8 + $0x1e8] sm:$0xf]
    %v1820 = vld [vmem:[#allocation8 + $0x1ec] sm:$0xf]
    %v1821 = vld [vmem:[#allocation8 + $0x1f0] sm:$0xf]
    %v1822 = vld [vmem:[#allocation8 + $0x1f4] sm:$0xf]
    %v1823 = vld [vmem:[#allocation8 + $0x1f8] sm:$0xf]
    %v1824 = vld [vmem:[#allocation8 + $0x1fc] sm:$0xf]
    %v1825 = vld [vmem:[%s4] sm:$0x1]
    %v1827 = vlaneseq
    %v1828 = vshrl.u32 %v1827, 7
    %v1829 = vsub.s32 0, %v1828
    %v1830 = vrot.slane %v1825, %v1829
    %v1960 = vunpack.c.l.b16 %v1697
    %v1961 = vunpack.c.l.b16 %v1698
    %v1962 = vunpack.c.l.b16 %v1699
    %v1963 = vunpack.c.l.b16 %v1700
    %v1964 = vunpack.c.l.b16 %v1701
    %v1965 = vunpack.c.l.b16 %v1702
    %v1966 = vunpack.c.l.b16 %v1703
    %v1967 = vunpack.c.l.b16 %v1704
    %v1968 = vunpack.c.l.b16 %v1705
    %v1969 = vunpack.c.l.b16 %v1706
    %v1970 = vunpack.c.l.b16 %v1707
    %v1971 = vunpack.c.l.b16 %v1708
    %v1972 = vunpack.c.l.b16 %v1709
    %v1973 = vunpack.c.l.b16 %v1710
    %v1974 = vunpack.c.l.b16 %v1711
    %v1975 = vunpack.c.l.b16 %v1712
    %v1976 = vunpack.c.l.b16 %v1713
    %v1977 = vunpack.c.l.b16 %v1714
    %v1978 = vunpack.c.l.b16 %v1715
    %v1979 = vunpack.c.l.b16 %v1716
    %v1980 = vunpack.c.l.b16 %v1717
    %v1981 = vunpack.c.l.b16 %v1718
    %v1982 = vunpack.c.l.b16 %v1719
    %v1983 = vunpack.c.l.b16 %v1720
    %v1984 = vunpack.c.l.b16 %v1721
    %v1985 = vunpack.c.l.b16 %v1722
    %v1986 = vunpack.c.l.b16 %v1723
    %v1987 = vunpack.c.l.b16 %v1724
    %v1988 = vunpack.c.l.b16 %v1725
    %v1989 = vunpack.c.l.b16 %v1726
    %v1990 = vunpack.c.l.b16 %v1727
    %v1991 = vunpack.c.l.b16 %v1728
    %v1992 = vunpack.c.l.b16 %v1729
    %v1993 = vunpack.c.l.b16 %v1730
    %v1994 = vunpack.c.l.b16 %v1731
    %v1995 = vunpack.c.l.b16 %v1732
    %v1996 = vunpack.c.l.b16 %v1733
    %v1997 = vunpack.c.l.b16 %v1734
    %v1998 = vunpack.c.l.b16 %v1735
    %v1999 = vunpack.c.l.b16 %v1736
    %v2000 = vunpack.c.l.b16 %v1737
    %v2001 = vunpack.c.l.b16 %v1738
    %v2002 = vunpack.c.l.b16 %v1739
    %v2003 = vunpack.c.l.b16 %v1740
    %v2004 = vunpack.c.l.b16 %v1741
    %v2005 = vunpack.c.l.b16 %v1742
    %v2006 = vunpack.c.l.b16 %v1743
    %v2007 = vunpack.c.l.b16 %v1744
    %v2008 = vunpack.c.l.b16 %v1745
    %v2009 = vunpack.c.l.b16 %v1746
    %v2010 = vunpack.c.l.b16 %v1747
    %v2011 = vunpack.c.l.b16 %v1748
    %v2012 = vunpack.c.l.b16 %v1749
    %v2013 = vunpack.c.l.b16 %v1750
    %v2014 = vunpack.c.l.b16 %v1751
    %v2015 = vunpack.c.l.b16 %v1752
    %v2016 = vunpack.c.l.b16 %v1753
    %v2017 = vunpack.c.l.b16 %v1754
    %v2018 = vunpack.c.l.b16 %v1755
    %v2019 = vunpack.c.l.b16 %v1756
    %v2020 = vunpack.c.l.b16 %v1757
    %v2021 = vunpack.c.l.b16 %v1758
    %v2022 = vunpack.c.l.b16 %v1759
    %v2023 = vunpack.c.l.b16 %v1760
    %v2024 = vunpack.c.l.b16 %v1761
    %v2025 = vunpack.c.l.b16 %v1762
    %v2026 = vunpack.c.l.b16 %v1763
    %v2027 = vunpack.c.l.b16 %v1764
    %v2028 = vunpack.c.l.b16 %v1765
    %v2029 = vunpack.c.l.b16 %v1766
    %v2030 = vunpack.c.l.b16 %v1767
    %v2031 = vunpack.c.l.b16 %v1768
    %v2032 = vunpack.c.l.b16 %v1769
    %v2033 = vunpack.c.l.b16 %v1770
    %v2034 = vunpack.c.l.b16 %v1771
    %v2035 = vunpack.c.l.b16 %v1772
    %v2036 = vunpack.c.l.b16 %v1773
    %v2037 = vunpack.c.l.b16 %v1774
    %v2038 = vunpack.c.l.b16 %v1775
    %v2039 = vunpack.c.l.b16 %v1776
    %v2040 = vunpack.c.l.b16 %v1777
    %v2041 = vunpack.c.l.b16 %v1778
    %v2042 = vunpack.c.l.b16 %v1779
    %v2043 = vunpack.c.l.b16 %v1780
    %v2044 = vunpack.c.l.b16 %v1781
    %v2045 = vunpack.c.l.b16 %v1782
    %v2046 = vunpack.c.l.b16 %v1783
    %v2047 = vunpack.c.l.b16 %v1784
    %v2048 = vunpack.c.l.b16 %v1785
    %v2049 = vunpack.c.l.b16 %v1786
    %v2050 = vunpack.c.l.b16 %v1787
    %v2051 = vunpack.c.l.b16 %v1788
    %v2052 = vunpack.c.l.b16 %v1789
    %v2053 = vunpack.c.l.b16 %v1790
    %v2054 = vunpack.c.l.b16 %v1791
    %v2055 = vunpack.c.l.b16 %v1792
    %v2056 = vunpack.c.l.b16 %v1793
    %v2057 = vunpack.c.l.b16 %v1794
    %v2058 = vunpack.c.l.b16 %v1795
    %v2059 = vunpack.c.l.b16 %v1796
    %v2060 = vunpack.c.l.b16 %v1797
    %v2061 = vunpack.c.l.b16 %v1798
    %v2062 = vunpack.c.l.b16 %v1799
    %v2063 = vunpack.c.l.b16 %v1800
    %v2064 = vunpack.c.l.b16 %v1801
    %v2065 = vunpack.c.l.b16 %v1802
    %v2066 = vunpack.c.l.b16 %v1803
    %v2067 = vunpack.c.l.b16 %v1804
    %v2068 = vunpack.c.l.b16 %v1805
    %v2069 = vunpack.c.l.b16 %v1806
    %v2070 = vunpack.c.l.b16 %v1807
    %v2071 = vunpack.c.l.b16 %v1808
    %v2072 = vunpack.c.l.b16 %v1809
    %v2073 = vunpack.c.l.b16 %v1810
    %v2074 = vunpack.c.l.b16 %v1811
    %v2075 = vunpack.c.l.b16 %v1812
    %v2076 = vunpack.c.l.b16 %v1813
    %v2077 = vunpack.c.l.b16 %v1814
    %v2078 = vunpack.c.l.b16 %v1815
    %v2079 = vunpack.c.l.b16 %v1816
    %v2080 = vunpack.c.l.b16 %v1817
    %v2081 = vunpack.c.l.b16 %v1818
    %v2082 = vunpack.c.l.b16 %v1819
    %v2083 = vunpack.c.l.b16 %v1820
    %v2084 = vunpack.c.l.b16 %v1821
    %v2085 = vunpack.c.l.b16 %v1822
    %v2086 = vunpack.c.l.b16 %v1823
    %v2087 = vunpack.c.l.b16 %v1824
    %v2088 = vpack.c.b16 %v1961, %v1960
    %v2089 = vpack.c.b16 %v1963, %v1962
    %v2090 = vpack.c.b16 %v1965, %v1964
    %v2091 = vpack.c.b16 %v1967, %v1966
    %v2092 = vpack.c.b16 %v1969, %v1968
    %v2093 = vpack.c.b16 %v1971, %v1970
    %v2094 = vpack.c.b16 %v1973, %v1972
    %v2095 = vpack.c.b16 %v1975, %v1974
    %v2096 = vpack.c.b16 %v1977, %v1976
    %v2097 = vpack.c.b16 %v1979, %v1978
    %v2098 = vpack.c.b16 %v1981, %v1980
    %v2099 = vpack.c.b16 %v1983, %v1982
    %v2100 = vpack.c.b16 %v1985, %v1984
    %v2101 = vpack.c.b16 %v1987, %v1986
    %v2102 = vpack.c.b16 %v1989, %v1988
    %v2103 = vpack.c.b16 %v1991, %v1990
    %v2104 = vpack.c.b16 %v1993, %v1992
    %v2105 = vpack.c.b16 %v1995, %v1994
    %v2106 = vpack.c.b16 %v1997, %v1996
    %v2107 = vpack.c.b16 %v1999, %v1998
    %v2108 = vpack.c.b16 %v2001, %v2000
    %v2109 = vpack.c.b16 %v2003, %v2002
    %v2110 = vpack.c.b16 %v2005, %v2004
    %v2111 = vpack.c.b16 %v2007, %v2006
    %v2112 = vpack.c.b16 %v2009, %v2008
    %v2113 = vpack.c.b16 %v2011, %v2010
    %v2114 = vpack.c.b16 %v2013, %v2012
    %v2115 = vpack.c.b16 %v2015, %v2014
    %v2116 = vpack.c.b16 %v2017, %v2016
    %v2117 = vpack.c.b16 %v2019, %v2018
    %v2118 = vpack.c.b16 %v2021, %v2020
    %v2119 = vpack.c.b16 %v2023, %v2022
    %v2120 = vpack.c.b16 %v2025, %v2024
    %v2121 = vpack.c.b16 %v2027, %v2026
    %v2122 = vpack.c.b16 %v2029, %v2028
    %v2123 = vpack.c.b16 %v2031, %v2030
    %v2124 = vpack.c.b16 %v2033, %v2032
    %v2125 = vpack.c.b16 %v2035, %v2034
    %v2126 = vpack.c.b16 %v2037, %v2036
    %v2127 = vpack.c.b16 %v2039, %v2038
    %v2128 = vpack.c.b16 %v2041, %v2040
    %v2129 = vpack.c.b16 %v2043, %v2042
    %v2130 = vpack.c.b16 %v2045, %v2044
    %v2131 = vpack.c.b16 %v2047, %v2046
    %v2132 = vpack.c.b16 %v2049, %v2048
    %v2133 = vpack.c.b16 %v2051, %v2050
    %v2134 = vpack.c.b16 %v2053, %v2052
    %v2135 = vpack.c.b16 %v2055, %v2054
    %v2136 = vpack.c.b16 %v2057, %v2056
    %v2137 = vpack.c.b16 %v2059, %v2058
    %v2138 = vpack.c.b16 %v2061, %v2060
    %v2139 = vpack.c.b16 %v2063, %v2062
    %v2140 = vpack.c.b16 %v2065, %v2064
    %v2141 = vpack.c.b16 %v2067, %v2066
    %v2142 = vpack.c.b16 %v2069, %v2068
    %v2143 = vpack.c.b16 %v2071, %v2070
    %v2144 = vpack.c.b16 %v2073, %v2072
    %v2145 = vpack.c.b16 %v2075, %v2074
    %v2146 = vpack.c.b16 %v2077, %v2076
    %v2147 = vpack.c.b16 %v2079, %v2078
    %v2148 = vpack.c.b16 %v2081, %v2080
    %v2149 = vpack.c.b16 %v2083, %v2082
    %v2150 = vpack.c.b16 %v2085, %v2084
    %v2151 = vpack.c.b16 %v2087, %v2086
    %2216 = vmatprep.subr.bf16.mxu0 0
    %2217 = vmatpush1.bf16.msra.mxu0 %v2095
    %2218 = vmatprep.subr.bf16.mxu0 0
    %2219 = vmatpush1.bf16.msra.mxu0 %v2094
    %2220 = vmatprep.subr.bf16.mxu0 0
    %2221 = vmatpush1.bf16.msra.mxu0 %v2093
    %2222 = vmatprep.subr.bf16.mxu0 0
    %2223 = vmatpush1.bf16.msra.mxu0 %v2092
    %2224 = vmatprep.subr.bf16.mxu0 0
    %2225 = vmatpush1.bf16.msra.mxu0 %v2091
    %2226 = vmatprep.subr.bf16.mxu0 0
    %2227 = vmatpush1.bf16.msra.mxu0 %v2090
    %2228 = vmatprep.subr.bf16.mxu0 0
    %2229 = vmatpush1.bf16.msra.mxu0 %v2089
    %2230 = vmatprep.subr.bf16.mxu0 0
    %2231 = vmatpush1.bf16.msra.mxu0 %v2088
    %2232 = vmatprep.subr.bf16.mxu0 0
    %2233 = vmatpush2.bf16.msra.mxu0 %v2103
    %2234 = vmatprep.subr.bf16.mxu0 0
    %2235 = vmatpush2.bf16.msra.mxu0 %v2102
    %2236 = vmatprep.subr.bf16.mxu0 0
    %2237 = vmatpush2.bf16.msra.mxu0 %v2101
    %2238 = vmatprep.subr.bf16.mxu0 0
    %2239 = vmatpush2.bf16.msra.mxu0 %v2100
    %2240 = vmatprep.subr.bf16.mxu0 0
    %2241 = vmatpush2.bf16.msra.mxu0 %v2099
    %2242 = vmatprep.subr.bf16.mxu0 0
    %2243 = vmatpush2.bf16.msra.mxu0 %v2098
    %2244 = vmatprep.subr.bf16.mxu0 0
    %2245 = vmatpush2.bf16.msra.mxu0 %v2097
    %2246 = vmatprep.subr.bf16.mxu0 0
    %2247 = vmatpush2.bf16.msra.mxu0 %v2096
    %2248 = vmatprep.mubr.bf16.mxu0 %v1690
    %2249 = vmatmul.mubr.bf16.gmra.mxu0 %v1689
    %v2250 = vpop.f32.mrf.mxu0
    %v2251 = vadd.f32 %v1830, %v2250
    %v2252 = vpop.f32.mrf.mxu0
    %v2253 = vpop.f32.mrf.mxu0
    %v2254 = vpop.f32.mrf.mxu0
    %2255 = vdwg.mxu0
    %2256 = vmatprep.subr.bf16.mxu0 0
    %2257 = vmatpush1.bf16.msra.mxu0 %v2111
    %2258 = vmatprep.subr.bf16.mxu0 0
    %2259 = vmatpush1.bf16.msra.mxu0 %v2110
    %2260 = vmatprep.subr.bf16.mxu0 0
    %2261 = vmatpush1.bf16.msra.mxu0 %v2109
    %2262 = vmatprep.subr.bf16.mxu0 0
    %2263 = vmatpush1.bf16.msra.mxu0 %v2108
    %2264 = vmatprep.subr.bf16.mxu0 0
    %2265 = vmatpush1.bf16.msra.mxu0 %v2107
    %2266 = vmatprep.subr.bf16.mxu0 0
    %2267 = vmatpush1.bf16.msra.mxu0 %v2106
    %2268 = vmatprep.subr.bf16.mxu0 0
    %2269 = vmatpush1.bf16.msra.mxu0 %v2105
    %2270 = vmatprep.subr.bf16.mxu0 0
    %2271 = vmatpush1.bf16.msra.mxu0 %v2104
    %2272 = vmatprep.subr.bf16.mxu0 0
    %2273 = vmatpush2.bf16.msra.mxu0 %v2119
    %2274 = vmatprep.subr.bf16.mxu0 0
    %2275 = vmatpush2.bf16.msra.mxu0 %v2118
    %2276 = vmatprep.subr.bf16.mxu0 0
    %2277 = vmatpush2.bf16.msra.mxu0 %v2117
    %2278 = vmatprep.subr.bf16.mxu0 0
    %2279 = vmatpush2.bf16.msra.mxu0 %v2116
    %2280 = vmatprep.subr.bf16.mxu0 0
    %2281 = vmatpush2.bf16.msra.mxu0 %v2115
    %2282 = vmatprep.subr.bf16.mxu0 0
    %2283 = vmatpush2.bf16.msra.mxu0 %v2114
    %2284 = vmatprep.subr.bf16.mxu0 0
    %2285 = vmatpush2.bf16.msra.mxu0 %v2113
    %2286 = vmatprep.subr.bf16.mxu0 0
    %2287 = vmatpush2.bf16.msra.mxu0 %v2112
    %2288 = vmatprep.mubr.bf16.mxu0 %v1692
    %2289 = vmatmul.mubr.bf16.gmra.mxu0 %v1691
    %v2290 = vpop.f32.mrf.mxu0
    %v2291 = vadd.f32 %v2251, %v2290
    %v2292 = vpop.f32.mrf.mxu0
    %v2293 = vpop.f32.mrf.mxu0
    %v2294 = vpop.f32.mrf.mxu0
    %2295 = vdwg.mxu0
    %2296 = vmatprep.subr.bf16.mxu0 0
    %2297 = vmatpush1.bf16.msra.mxu0 %v2127
    %2298 = vmatprep.subr.bf16.mxu0 0
    %2299 = vmatpush1.bf16.msra.mxu0 %v2126
    %2300 = vmatprep.subr.bf16.mxu0 0
    %2301 = vmatpush1.bf16.msra.mxu0 %v2125
    %2302 = vmatprep.subr.bf16.mxu0 0
    %2303 = vmatpush1.bf16.msra.mxu0 %v2124
    %2304 = vmatprep.subr.bf16.mxu0 0
    %2305 = vmatpush1.bf16.msra.mxu0 %v2123
    %2306 = vmatprep.subr.bf16.mxu0 0
    %2307 = vmatpush1.bf16.msra.mxu0 %v2122
    %2308 = vmatprep.subr.bf16.mxu0 0
    %2309 = vmatpush1.bf16.msra.mxu0 %v2121
    %2310 = vmatprep.subr.bf16.mxu0 0
    %2311 = vmatpush1.bf16.msra.mxu0 %v2120
    %2312 = vmatprep.subr.bf16.mxu0 0
    %2313 = vmatpush2.bf16.msra.mxu0 %v2135
    %2314 = vmatprep.subr.bf16.mxu0 0
    %2315 = vmatpush2.bf16.msra.mxu0 %v2134
    %2316 = vmatprep.subr.bf16.mxu0 0
    %2317 = vmatpush2.bf16.msra.mxu0 %v2133
    %2318 = vmatprep.subr.bf16.mxu0 0
    %2319 = vmatpush2.bf16.msra.mxu0 %v2132
    %2320 = vmatprep.subr.bf16.mxu0 0
    %2321 = vmatpush2.bf16.msra.mxu0 %v2131
    %2322 = vmatprep.subr.bf16.mxu0 0
    %2323 = vmatpush2.bf16.msra.mxu0 %v2130
    %2324 = vmatprep.subr.bf16.mxu0 0
    %2325 = vmatpush2.bf16.msra.mxu0 %v2129
    %2326 = vmatprep.subr.bf16.mxu0 0
    %2327 = vmatpush2.bf16.msra.mxu0 %v2128
    %2328 = vmatprep.mubr.bf16.mxu0 %v1694
    %2329 = vmatmul.mubr.bf16.gmra.mxu0 %v1693
    %v2330 = vpop.f32.mrf.mxu0
    %v2331 = vadd.f32 %v2291, %v2330
    %v2332 = vpop.f32.mrf.mxu0
    %v2333 = vpop.f32.mrf.mxu0
    %v2334 = vpop.f32.mrf.mxu0
    %2335 = vdwg.mxu0
    %2336 = vmatprep.subr.bf16.mxu0 0
    %2337 = vmatpush1.bf16.msra.mxu0 %v2143
    %2338 = vmatprep.subr.bf16.mxu0 0
    %2339 = vmatpush1.bf16.msra.mxu0 %v2142
    %2340 = vmatprep.subr.bf16.mxu0 0
    %2341 = vmatpush1.bf16.msra.mxu0 %v2141
    %2342 = vmatprep.subr.bf16.mxu0 0
    %2343 = vmatpush1.bf16.msra.mxu0 %v2140
    %2344 = vmatprep.subr.bf16.mxu0 0
    %2345 = vmatpush1.bf16.msra.mxu0 %v2139
    %2346 = vmatprep.subr.bf16.mxu0 0
    %2347 = vmatpush1.bf16.msra.mxu0 %v2138
    %2348 = vmatprep.subr.bf16.mxu0 0
    %2349 = vmatpush1.bf16.msra.mxu0 %v2137
    %2350 = vmatprep.subr.bf16.mxu0 0
    %2351 = vmatpush1.bf16.msra.mxu0 %v2136
    %2352 = vmatprep.subr.bf16.mxu0 0
    %2353 = vmatpush2.bf16.msra.mxu0 %v2151
    %2354 = vmatprep.subr.bf16.mxu0 0
    %2355 = vmatpush2.bf16.msra.mxu0 %v2150
    %2356 = vmatprep.subr.bf16.mxu0 0
    %2357 = vmatpush2.bf16.msra.mxu0 %v2149
    %2358 = vmatprep.subr.bf16.mxu0 0
    %2359 = vmatpush2.bf16.msra.mxu0 %v2148
    %2360 = vmatprep.subr.bf16.mxu0 0
    %2361 = vmatpush2.bf16.msra.mxu0 %v2147
    %2362 = vmatprep.subr.bf16.mxu0 0
    %2363 = vmatpush2.bf16.msra.mxu0 %v2146
    %2364 = vmatprep.subr.bf16.mxu0 0
    %2365 = vmatpush2.bf16.msra.mxu0 %v2145
    %2366 = vmatprep.subr.bf16.mxu0 0
    %2367 = vmatpush2.bf16.msra.mxu0 %v2144
    %2368 = vmatprep.mubr.bf16.mxu0 %v1696
    %2369 = vmatmul.mubr.bf16.gmra.mxu0 %v1695
    %v2370 = vpop.f32.mrf.mxu0
    %v2371 = vadd.f32 %v2331, %v2370
    %v2372 = vpop.f32.mrf.mxu0
    %v2373 = vpop.f32.mrf.mxu0
    %v2374 = vpop.f32.mrf.mxu0
    %2375 = vdwg.mxu0
    %v2376 = vmax.f32 %v2371, 0.0
    %v2377 = vpack.c.bf16 %v2376, %v2376
    %v2378 = vld [vmem:[#allocation10] sm:$0xf]
    %v2379 = vld [vmem:[#allocation10 + $0x4] sm:$0xf]
    %v2380 = vld [vmem:[#allocation10 + $0x8] sm:$0xf]
    %v2381 = vld [vmem:[#allocation10 + $0xc] sm:$0xf]
    %v2382 = vld [vmem:[#allocation10 + $0x10] sm:$0xf]
    %v2383 = vld [vmem:[#allocation10 + $0x14] sm:$0xf]
    %v2384 = vld [vmem:[#allocation10 + $0x18] sm:$0xf]
    %v2385 = vld [vmem:[#allocation10 + $0x1c] sm:$0xf]
    %v2386 = vld [vmem:[#allocation10 + $0x20] sm:$0xf]
    %v2387 = vld [vmem:[#allocation10 + $0x24] sm:$0xf]
    %v2388 = vld [vmem:[#allocation10 + $0x28] sm:$0xf]
    %v2389 = vld [vmem:[#allocation10 + $0x2c] sm:$0xf]
    %v2390 = vld [vmem:[#allocation10 + $0x30] sm:$0xf]
    %v2391 = vld [vmem:[#allocation10 + $0x34] sm:$0xf]
    %v2392 = vld [vmem:[#allocation10 + $0x38] sm:$0xf]
    %v2393 = vld [vmem:[#allocation10 + $0x3c] sm:$0xf]
    %v2394 = vld [vmem:[%s6] sm:$0x1]
    %v2396 = vlaneseq
    %v2397 = vshrl.u32 %v2396, 7
    %v2398 = vsub.s32 0, %v2397
    %v2399 = vrot.slane %v2394, %v2398
    %v2417 = vunpack.c.l.b16 %v2378
    %v2418 = vunpack.c.l.b16 %v2379
    %v2419 = vunpack.c.l.b16 %v2380
    %v2420 = vunpack.c.l.b16 %v2381
    %v2421 = vunpack.c.l.b16 %v2382
    %v2422 = vunpack.c.l.b16 %v2383
    %v2423 = vunpack.c.l.b16 %v2384
    %v2424 = vunpack.c.l.b16 %v2385
    %v2425 = vunpack.c.l.b16 %v2386
    %v2426 = vunpack.c.l.b16 %v2387
    %v2427 = vunpack.c.l.b16 %v2388
    %v2428 = vunpack.c.l.b16 %v2389
    %v2429 = vunpack.c.l.b16 %v2390
    %v2430 = vunpack.c.l.b16 %v2391
    %v2431 = vunpack.c.l.b16 %v2392
    %v2432 = vunpack.c.l.b16 %v2393
    %v2433 = vpack.c.b16 %v2418, %v2417
    %v2434 = vpack.c.b16 %v2420, %v2419
    %v2435 = vpack.c.b16 %v2422, %v2421
    %v2436 = vpack.c.b16 %v2424, %v2423
    %v2437 = vpack.c.b16 %v2426, %v2425
    %v2438 = vpack.c.b16 %v2428, %v2427
    %v2439 = vpack.c.b16 %v2430, %v2429
    %v2440 = vpack.c.b16 %v2432, %v2431
    %2449 = vmatprep.subr.bf16.mxu0 0
    %2450 = vmatpush1.bf16.msra.mxu0 %v2440
    %2451 = vmatprep.subr.bf16.mxu0 0
    %2452 = vmatpush1.bf16.msra.mxu0 %v2439
    %2453 = vmatprep.subr.bf16.mxu0 0
    %2454 = vmatpush1.bf16.msra.mxu0 %v2438
    %2455 = vmatprep.subr.bf16.mxu0 0
    %2456 = vmatpush1.bf16.msra.mxu0 %v2437
    %2457 = vmatprep.subr.bf16.mxu0 0
    %2458 = vmatpush1.bf16.msra.mxu0 %v2436
    %2459 = vmatprep.subr.bf16.mxu0 0
    %2460 = vmatpush1.bf16.msra.mxu0 %v2435
    %2461 = vmatprep.subr.bf16.mxu0 0
    %2462 = vmatpush1.bf16.msra.mxu0 %v2434
    %2463 = vmatprep.subr.bf16.mxu0 0
    %2464 = vmatpush1.bf16.msra.mxu0 %v2433
    %2465 = vmatprep.subr.bf16.mxu0 0
    %2466 = vmatpush2.bf16.msra.mxu0 0
    %2467 = vmatprep.subr.bf16.mxu0 0
    %2468 = vmatpush2.bf16.msra.mxu0 0
    %2469 = vmatprep.subr.bf16.mxu0 0
    %2470 = vmatpush2.bf16.msra.mxu0 0
    %2471 = vmatprep.subr.bf16.mxu0 0
    %2472 = vmatpush2.bf16.msra.mxu0 0
    %2473 = vmatprep.subr.bf16.mxu0 0
    %2474 = vmatpush2.bf16.msra.mxu0 0
    %2475 = vmatprep.subr.bf16.mxu0 0
    %2476 = vmatpush2.bf16.msra.mxu0 0
    %2477 = vmatprep.subr.bf16.mxu0 0
    %2478 = vmatpush2.bf16.msra.mxu0 0
    %2479 = vmatprep.subr.bf16.mxu0 0
    %2480 = vmatpush2.bf16.msra.mxu0 0
    %2481 = vmatprep.mubr.bf16.mxu0 0
    %2482 = vmatmul.mubr.bf16.gmra.mxu0 %v2377
    %v2483 = vpop.f32.mrf.mxu0
    %v2484 = vadd.f32 %v2399, %v2483
    %v2485 = vpop.f32.mrf.mxu0
    %v2486 = vpop.f32.mrf.mxu0
    %v2487 = vpop.f32.mrf.mxu0
    %2488 = vdwg.mxu0
    %v2489 = vlaneseq
    %v2490 = vand.u32 %v2489, 127
    %vm2491 = vcmask 64512
    %v2492 = vsel %vm2491, %v2484, -inf
    %2493 = vmax.xlane.f32.xlu0 %v2492
    %v2494 = vpop.xlane.xlu0 %2493
    %v2495 = vsub.f32 %v2484, %v2494
    %v2496 = vmul.f32 %v2495, 1.442695
    %v2497 = vpow.pop %v2496
    %v2498 = vsel %vm2491, %v2497, 0.0
    %2499 = vadd.xlane.f32.xlu0 %v2498
    %v2500 = vpop.xlane.xlu0 %2499
    %vm2501 = vcmp.ge.s32.totalorder %v2490, 0
    %vm2502 = vcmp.lt.s32.totalorder %v2490, 8
    %vm2503 = vmand %vm2501, %vm2502
    %v2504 = vsel %vm2503, 1, 0
    %vm2505 = vcmp.eq.s32.totalorder %v2504, 1
    %v2506 = vsel %vm2505, %v2494, 0.0
    %v2507 = vsel %vm2505, %v2500, 1.0
    %vm2508 = vcmask 130112
    %v2509 = vsel %vm2508, %v2484, -inf
    %2510 = vmax.xlane.f32.xlu0 %v2509
    %v2511 = vpop.xlane.xlu0 %2510
    %v2512 = vsub.f32 %v2484, %v2511
    %v2513 = vmul.f32 %v2512, 1.442695
    %v2514 = vpow.pop %v2513
    %2516 = vrot.lane.b32.xlu0 %v2514, 120
    %v2517 = vpop.permute.xlu0 %2516
    %v2519 = vsel %vm2491, %v2517, 0.0
    %2520 = vadd.xlane.f32.xlu0 %v2519
    %v2521 = vpop.xlane.xlu0 %2520
    %vm2522 = vcmp.ge.s32.totalorder %v2490, 8
    %vm2523 = vcmp.lt.s32.totalorder %v2490, 16
    %vm2524 = vmand %vm2522, %vm2523
    %v2525 = vsel %vm2524, 1, 0
    %vm2526 = vcmp.eq.s32.totalorder %v2525, 1
    %v2527 = vsel %vm2526, %v2511, %v2506
    %v2528 = vsel %vm2526, %v2521, %v2507
    %vm2529 = vcmask 195712
    %v2530 = vsel %vm2529, %v2484, -inf
    %2531 = vmax.xlane.f32.xlu0 %v2530
    %v2532 = vpop.xlane.xlu0 %2531
    %v2533 = vsub.f32 %v2484, %v2532
    %v2534 = vmul.f32 %v2533, 1.442695
    %v2535 = vpow.pop %v2534
    %2537 = vrot.lane.b32.xlu0 %v2535, 112
    %v2538 = vpop.permute.xlu0 %2537
    %v2540 = vsel %vm2491, %v2538, 0.0
    %2541 = vadd.xlane.f32.xlu0 %v2540
    %v2542 = vpop.xlane.xlu0 %2541
    %vm2543 = vcmp.ge.s32.totalorder %v2490, 16
    %vm2544 = vcmp.lt.s32.totalorder %v2490, 24
    %vm2545 = vmand %vm2543, %vm2544
    %v2546 = vsel %vm2545, 1, 0
    %vm2547 = vcmp.eq.s32.totalorder %v2546, 1
    %v2548 = vsel %vm2547, %v2532, %v2527
    %v2549 = vsel %vm2547, %v2542, %v2528
    %vm2550 = vcmask 261312
    %v2551 = vsel %vm2550, %v2484, -inf
    %2552 = vmax.xlane.f32.xlu0 %v2551
    %v2553 = vpop.xlane.xlu0 %2552
    %v2554 = vsub.f32 %v2484, %v2553
    %v2555 = vmul.f32 %v2554, 1.442695
    %v2556 = vpow.pop %v2555
    %2558 = vrot.lane.b32.xlu0 %v2556, 104
    %v2559 = vpop.permute.xlu0 %2558
    %v2561 = vsel %vm2491, %v2559, 0.0
    %2562 = vadd.xlane.f32.xlu0 %v2561
    %v2563 = vpop.xlane.xlu0 %2562
    %vm2564 = vcmp.ge.s32.totalorder %v2490, 24
    %vm2565 = vcmp.lt.s32.totalorder %v2490, 32
    %vm2566 = vmand %vm2564, %vm2565
    %v2567 = vsel %vm2566, 1, 0
    %vm2568 = vcmp.eq.s32.totalorder %v2567, 1
    %v2569 = vsel %vm2568, %v2553, %v2548
    %v2570 = vsel %vm2568, %v2563, %v2549
    %v2571 = vsub.f32 %v2484, %v2569
    %v2572 = vmul.f32 %v2571, 1.442695
    %v2573 = vpow.pop %v2572
    %v2574 = vrcp.pop %v2570
    %v2575 = vmul.f32 %v2573, %v2574
    %2576 = vst [vmem:[#allocation11] sm:$0xff] %v2575
    // Predicated region
    $region50: #{tpu_custom_call.1} parent=1 // pred_check
      _
    $region51: #{tpu_custom_call.1} parent=1 // pred_check_branch
      %2578 = sbr.rel (0) target = $region53
    $region52: #{tpu_custom_call.1} parent=1 // pred_region
      %s2580 = ssub.s32 128, 128
      %2581 = vsyncadd [#allocation4], %s2580
      %s2583 = sshll.u32 [#allocation11], 4
      %s2584 = int_to_ptr.vmem [resolvable:$true] %s2583
      %2586 = dma.vmem_to_hbm [thread:$0]  %s2584, 128, %s7, [#allocation4]
    $region53: #{tpu_custom_call.1} parent=1 // pred_fallthru
      _
    // Predicated region
    $region54: #{tpu_custom_call.1} parent=1 // pred_check
      _
    $region55: #{tpu_custom_call.1} parent=1 // pred_check_branch
      %2588 = sbr.rel (0) target = $region57
    $region56: #{tpu_custom_call.1} parent=1 // pred_region
      %2589 = dma.done [#allocation4], 128
    $region57: #{tpu_custom_call.1} parent=1 // pred_fallthru
      _
    %2590 = vsyncpa [#allocation3], 1
    %2591 = vsyncpa [#allocation6], 1
    %2592 = vsyncpa [#allocation9], 1
    %2593 = vsyncpa [#allocation4], 1

</llo_original>
